<compile_context>
chip_gen: v6e
topology: v6e:2x2x1
jax: 0.10.0
libtpu: 0.0.40
codegen_flags: <defaults>
</compile_context>

<pallas_src>
import functools

import jax
import jax.numpy as jnp
import numpy as np
from jax import lax
from jax.experimental import pallas as pl
from jax.experimental.pallas import tpu as pltpu


# ---------------------------------------------------------------------------
# helpers
# ---------------------------------------------------------------------------
def _round_up(x, m):
    return ((x + m - 1) // m) * m


def _row_tile(rows, max_tile=512):
    """Largest divisor of `rows` (a multiple of 8) that is <= max_tile."""
    t = min(rows, max_tile)
    while rows % t:
        t -= 8
    return t


# ---------------------------------------------------------------------------
# Kernel 1 & 3: batched projection  y = [sigmoid](x @ W + b)
# ---------------------------------------------------------------------------
def _proj_kernel(x_ref, w_ref, b_ref, o_ref, *, sigmoid):
    acc = jnp.dot(x_ref[...], w_ref[...],
                  preferred_element_type=jnp.float32) + b_ref[...]
    if sigmoid:
        acc = jax.nn.sigmoid(acc)
    o_ref[...] = acc.astype(o_ref.dtype)


def _pallas_proj(x, w, b, *, sigmoid):
    """x: (rows, K), w: (K, N), b: (1, N) -> (rows, N). rows % 8 == 0, N % 128 == 0."""
    rows, k = x.shape
    n = w.shape[1]
    tm = _row_tile(rows)
    return pl.pallas_call(
        functools.partial(_proj_kernel, sigmoid=sigmoid),
        out_shape=jax.ShapeDtypeStruct((rows, n), jnp.float32),
        grid_spec=pltpu.PrefetchScalarGridSpec(
            num_scalar_prefetch=0,
            grid=(rows // tm,),
            in_specs=[
                pl.BlockSpec((tm, k), lambda i: (i, 0)),
                pl.BlockSpec((k, n), lambda i: (0, 0)),
                pl.BlockSpec((1, n), lambda i: (0, 0)),
            ],
            out_specs=pl.BlockSpec((tm, n), lambda i: (i, 0)),
        ),
        compiler_params=pltpu.CompilerParams(
            dimension_semantics=("parallel",)),   # megacore-shardable on v7x
    )(x, w, b)


# ---------------------------------------------------------------------------
# Kernel 2: time-chunked LSTM recurrence (only h @ W_hh^T on serial path)
# ---------------------------------------------------------------------------
def _lstm_chunk_kernel(gx_ref, whh_ref, h_out_ref, h_sc, c_sc, *, tq, hpad):
    chunk = pl.program_id(0)

    @pl.when(chunk == 0)
    def _():
        h_sc[...] = jnp.zeros_like(h_sc)
        c_sc[...] = jnp.zeros_like(c_sc)

    whh = whh_ref[...]            # (H_pad, 4*H_pad), resident across chunk
    h0 = h_sc[...]
    c0 = c_sc[...]

    def step(i, carry):
        h, c = carry
        # gates_x already contains x_t @ W_ih^T + (b_ih + b_hh)
        gates = gx_ref[i] + jnp.dot(h, whh,
                                    preferred_element_type=jnp.float32)
        # PyTorch gate order i, f, g, o; slices are 128-lane aligned (hpad=128k)
        i_g = jax.nn.sigmoid(gates[:, 0 * hpad:1 * hpad])
        f_g = jax.nn.sigmoid(gates[:, 1 * hpad:2 * hpad])
        g_g = jnp.tanh(gates[:, 2 * hpad:3 * hpad])
        o_g = jax.nn.sigmoid(gates[:, 3 * hpad:4 * hpad])
        c_new = f_g * c + i_g * g_g
        h_new = o_g * jnp.tanh(c_new)
        h_out_ref[i] = h_new
        return (h_new, c_new)

    h_f, c_f = lax.fori_loop(0, tq, step, (h0, c0), unroll=True)
    h_sc[...] = h_f
    c_sc[...] = c_f


def _pallas_lstm(gx_tm, whh_t, *, tq):
    """gx_tm: (T_pad, B_pad, 4*H_pad) time-major precomputed input gates."""
    t_pad, b_pad, h4 = gx_tm.shape
    h_pad = h4 // 4
    kernel = functools.partial(_lstm_chunk_kernel, tq=tq, hpad=h_pad)
    return pl.pallas_call(
        kernel,
        out_shape=jax.ShapeDtypeStruct((t_pad, b_pad, h_pad), jnp.float32),
        grid_spec=pltpu.PrefetchScalarGridSpec(
            num_scalar_prefetch=0,
            grid=(t_pad // tq,),
            in_specs=[
                pl.BlockSpec((tq, b_pad, h4), lambda t: (t, 0, 0)),
                pl.BlockSpec((h_pad, h4), lambda t: (0, 0)),
            ],
            out_specs=pl.BlockSpec((tq, b_pad, h_pad), lambda t: (t, 0, 0)),
            scratch_shapes=[
                pltpu.VMEM((b_pad, h_pad), jnp.float32),   # h carry
                pltpu.VMEM((b_pad, h_pad), jnp.float32),   # c carry
            ],
        ),
        compiler_params=pltpu.CompilerParams(
            dimension_semantics=("arbitrary",)),   # sequential recurrence
    )(gx_tm, whh_t)


# ---------------------------------------------------------------------------
# Forward pass
# ---------------------------------------------------------------------------
def dkt_forward(q, r, params, *, tq=8):
    """q, r: int32 [B, T]. Returns y: float32 [B, T, num_q]."""
    emb = params["emb"]            # (2*num_q, E)
    w_ih = params["w_ih"]          # (4H, E)
    w_hh = params["w_hh"]          # (4H, H)
    b_ih = params["b_ih"]          # (4H,)
    b_hh = params["b_hh"]          # (4H,)
    w_out = params["w_out"]        # (num_q, H)
    b_out = params["b_out"]        # (num_q,)

    num_q = w_out.shape[0]
    E = emb.shape[1]
    H = w_hh.shape[1]
    B, T = q.shape

    # hardware-tile padding: sublane=8 on batch, lane=128 on H / num_q
    b_pad = _round_up(B, 8)
    h_pad = _round_up(H, 128)
    q_pad = _round_up(num_q, 128)
    t_pad = _round_up(T, tq)

    # --- glue: embedding gather directly in time-major layout ---
    x_idx_tm = jnp.transpose(q + num_q * r)            # (T, B)
    x_tm = jnp.take(emb, x_idx_tm, axis=0)             # (T, B, E)
    x_tm = jnp.pad(x_tm, ((0, t_pad - T), (0, b_pad - B), (0, 0)))

    # --- per-gate padded weight layouts (gate slices 128-lane aligned) ---
    wih_t = jnp.pad(w_ih.reshape(4, H, E),
                    ((0, 0), (0, h_pad - H), (0, 0)))
    wih_t = wih_t.transpose(2, 0, 1).reshape(E, 4 * h_pad)        # (E, 4H_pad)
    whh_t = jnp.pad(w_hh.reshape(4, H, H),
                    ((0, 0), (0, h_pad - H), (0, h_pad - H)))
    whh_t = whh_t.transpose(2, 0, 1).reshape(h_pad, 4 * h_pad)    # (H_pad, 4H_pad)
    b_gates = jnp.pad((b_ih + b_hh).reshape(4, H),
                      ((0, 0), (0, h_pad - H))).reshape(1, 4 * h_pad)
    wout_t = jnp.pad(w_out, ((0, q_pad - num_q), (0, h_pad - H))).T  # (H_pad, Q_pad)
    bout_p = jnp.pad(b_out, (0, q_pad - num_q)).reshape(1, q_pad)

    rows = t_pad * b_pad

    # 1) input projection for all timesteps at once (non-recurrent, parallel)
    gx = _pallas_proj(x_tm.reshape(rows, E), wih_t, b_gates, sigmoid=False)
    gx_tm = gx.reshape(t_pad, b_pad, 4 * h_pad)

    # 2) serial recurrence over time chunks (only h @ W_hh^T per step)
    h_tm = _pallas_lstm(gx_tm, whh_t, tq=tq)           # (T_pad, B_pad, H_pad)

    # 3) output projection + sigmoid for all timesteps at once
    #    (Dropout is identity in eval mode.)
    y_flat = _pallas_proj(h_tm.reshape(rows, h_pad), wout_t, bout_p,
                          sigmoid=True)                # (rows, Q_pad)
    y_tm = y_flat.reshape(t_pad, b_pad, q_pad)[:T, :B, :num_q]
    return jnp.transpose(y_tm, (1, 0, 2))              # (B, T, num_q)

    # TODO(synk): for v7x, batch-shard the recurrent kernel across the 2
    # TensorCores (leading "parallel" batch grid axis) when B_pad >= 16.


# ---------------------------------------------------------------------------
# Pure-JAX reference (lax.scan LSTM) for correctness checking
# ---------------------------------------------------------------------------
def dkt_reference(q, r, params):
    emb = params["emb"]
    w_ih, w_hh = params["w_ih"], params["w_hh"]
    b_ih, b_hh = params["b_ih"], params["b_hh"]
    w_out, b_out = params["w_out"], params["b_out"]
    num_q = w_out.shape[0]
    H = w_hh.shape[1]

    x_idx = q + num_q * r
    x = jnp.take(emb, x_idx, axis=0)            # (B, T, E)
    B = x.shape[0]

    def step(carry, x_t):
        h, c = carry
        gates = x_t @ w_ih.T + h @ w_hh.T + b_ih + b_hh
        i = jax.nn.sigmoid(gates[:, 0 * H:1 * H])
        f = jax.nn.sigmoid(gates[:, 1 * H:2 * H])
        g = jnp.tanh(gates[:, 2 * H:3 * H])
        o = jax.nn.sigmoid(gates[:, 3 * H:4 * H])
        c_new = f * c + i * g
        h_new = o * jnp.tanh(c_new)
        return (h_new, c_new), h_new

    h0 = jnp.zeros((B, H), jnp.float32)
    _, hs = lax.scan(step, (h0, h0), jnp.transpose(x, (1, 0, 2)))
    hs = jnp.transpose(hs, (1, 0, 2))           # (B, T, H)
    y = hs @ w_out.T + b_out
    return jax.nn.sigmoid(y)


def init_params(key, num_q, emb_size, hidden_size):
    ks = jax.random.split(key, 7)
    H = hidden_size
    s = 1.0 / np.sqrt(H)
    return {
        "emb": jax.random.normal(ks[0], (2 * num_q, emb_size), jnp.float32),
        "w_ih": jax.random.uniform(ks[1], (4 * H, emb_size), jnp.float32, -s, s),
        "w_hh": jax.random.uniform(ks[2], (4 * H, H), jnp.float32, -s, s),
        "b_ih": jax.random.uniform(ks[3], (4 * H,), jnp.float32, -s, s),
        "b_hh": jax.random.uniform(ks[4], (4 * H,), jnp.float32, -s, s),
        "w_out": jax.random.uniform(ks[5], (num_q, H), jnp.float32, -s, s),
        "b_out": jax.random.uniform(ks[6], (num_q,), jnp.float32, -s, s),
    }


if __name__ == "__main__":
    # TODO(synk): training-mode stochastic Dropout would use pltpu.prng_seed /
    # pltpu.stateful_bernoulli; modeled here in eval mode (identity).
    num_q, emb_size, hidden_size = 16, 32, 32
    batch, seq_len = 2, 8

    key = jax.random.PRNGKey(0)
    k_param, k_q, k_r = jax.random.split(key, 3)
    params = init_params(k_param, num_q, emb_size, hidden_size)

    q = jax.random.randint(k_q, (batch, seq_len), 0, num_q, dtype=jnp.int32)
    r = jax.random.randint(k_r, (batch, seq_len), 0, 2, dtype=jnp.int32)

    y = jax.block_until_ready(jax.jit(dkt_forward)(q, r, params))
    y_ref = jax.block_until_ready(dkt_reference(q, r, params))

    assert y.shape == (batch, seq_len, num_q)
    np.testing.assert_allclose(np.asarray(y), np.asarray(y_ref),
                               rtol=1e-5, atol=1e-5)
    print("KERNEL_OK")
</pallas_src>

<mosaic_0001>
module attributes {stable_mosaic.version = 11 : i64} {
  func.func @_proj_kernel(%arg0: i32, %arg1: memref<64x32xf32, #tpu.memory_space<vmem>>, %arg2: memref<32x512xf32, #tpu.memory_space<vmem>>, %arg3: memref<1x512xf32, #tpu.memory_space<vmem>>, %arg4: memref<64x512xf32, #tpu.memory_space<vmem>>) attributes {dimension_semantics = [#tpu.dimension_semantics<parallel>], iteration_bounds = array<i64: 1>, scalar_prefetch = 0 : i64, scratch_operands = 0 : i64, tpu.core_type = #tpu.core_type<tc>, window_params = [{transform_indices = @transform_0, window_bounds = array<i64: 64, 32>}, {pipeline_mode = #tpu.pipeline_mode<synchronous>, transform_indices = @transform_1, window_bounds = array<i64: 32, 512>}, {pipeline_mode = #tpu.pipeline_mode<synchronous>, transform_indices = @transform_2, window_bounds = array<i64: 1, 512>}, {transform_indices = @transform_3, window_bounds = array<i64: 64, 512>}]} {
    %c0 = arith.constant 0 : index
    %c0_0 = arith.constant 0 : index
    %0 = vector.load %arg1[%c0, %c0_0] : memref<64x32xf32, #tpu.memory_space<vmem>>, vector<64x32xf32>
    %c0_1 = arith.constant 0 : index
    %c0_2 = arith.constant 0 : index
    %1 = vector.load %arg2[%c0_1, %c0_2] : memref<32x512xf32, #tpu.memory_space<vmem>>, vector<32x512xf32>
    %cst = arith.constant dense<0.000000e+00> : vector<64x512xf32>
    %2 = tpu.matmul %0, %1, %cst {dimension_numbers = #tpu.dot_dimension_numbers<[1], [0], [0], [1], [0, 0, 1, 1], [], []>} : vector<64x32xf32>, vector<32x512xf32>, vector<64x512xf32> -> vector<64x512xf32>
    %c0_3 = arith.constant 0 : index
    %c0_4 = arith.constant 0 : index
    %3 = vector.load %arg3[%c0_3, %c0_4] : memref<1x512xf32, #tpu.memory_space<vmem>>, vector<1x512xf32>
    %4 = vector.broadcast %3 : vector<1x512xf32> to vector<64x512xf32>
    %5 = arith.addf %2, %4 : vector<64x512xf32>
    %c0_5 = arith.constant 0 : index
    %c0_6 = arith.constant 0 : index
    %6 = vector.load %arg4[%c0_5, %c0_6] : memref<64x512xf32, #tpu.memory_space<vmem>>, vector<64x512xf32>
    tpu.vector_store %arg4[%c0_5, %c0_6], %5 {strides = array<i32>} : memref<64x512xf32, #tpu.memory_space<vmem>>, vector<64x512xf32>,
    return
  }
  func.func @transform_0(%arg0: i32) -> (i32, i32) {
    %c0_i32 = arith.constant 0 : i32
    %c0_i32_0 = arith.constant 0 : i32
    return %arg0, %c0_i32 : i32, i32
  }
  func.func @transform_1(%arg0: i32) -> (i32, i32) {
    %c0_i32 = arith.constant 0 : i32
    %c0_i32_0 = arith.constant 0 : i32
    %c0_i32_1 = arith.constant 0 : i32
    return %c0_i32, %c0_i32_0 : i32, i32
  }
  func.func @transform_2(%arg0: i32) -> (i32, i32) {
    %c0_i32 = arith.constant 0 : i32
    %c0_i32_0 = arith.constant 0 : i32
    %c0_i32_1 = arith.constant 0 : i32
    return %c0_i32, %c0_i32_0 : i32, i32
  }
  func.func @transform_3(%arg0: i32) -> (i32, i32) {
    %c0_i32 = arith.constant 0 : i32
    %c0_i32_0 = arith.constant 0 : i32
    return %arg0, %c0_i32 : i32, i32
  }
}

module attributes {stable_mosaic.version = 11 : i64} {
  func.func @_lstm_chunk_kernel(%arg0: i32, %arg1: memref<8x8x512xf32, #tpu.memory_space<vmem>>, %arg2: memref<128x512xf32, #tpu.memory_space<vmem>>, %arg3: memref<8x8x128xf32, #tpu.memory_space<vmem>>, %arg4: memref<8x128xf32, #tpu.memory_space<vmem>>, %arg5: memref<8x128xf32, #tpu.memory_space<vmem>>) attributes {dimension_semantics = [#tpu.dimension_semantics<arbitrary>], iteration_bounds = array<i64: 1>, scalar_prefetch = 0 : i64, scratch_operands = 2 : i64, tpu.core_type = #tpu.core_type<tc>, window_params = [{transform_indices = @transform_0, window_bounds = array<i64: 8, 8, 512>}, {pipeline_mode = #tpu.pipeline_mode<synchronous>, transform_indices = @transform_1, window_bounds = array<i64: 128, 512>}, {transform_indices = @transform_2, window_bounds = array<i64: 8, 8, 128>}]} {
    %c0_i32 = arith.constant 0 : i32
    %0 = arith.cmpi eq, %arg0, %c0_i32 : i32
    %1 = arith.extui %0 : i1 to i32
    %c0_i32_0 = arith.constant 0 : i32
    %2 = arith.cmpi ne, %1, %c0_i32_0 : i32
    scf.if %2 {
      %cst_74 = arith.constant 0.000000e+00 : f32
      %280 = vector.broadcast %cst_74 : f32 to vector<8x128xf32>
      %c0_75 = arith.constant 0 : index
      %c0_76 = arith.constant 0 : index
      %281 = vector.load %arg4[%c0_75, %c0_76] : memref<8x128xf32, #tpu.memory_space<vmem>>, vector<8x128xf32>
      tpu.vector_store %arg4[%c0_75, %c0_76], %280 {strides = array<i32>} : memref<8x128xf32, #tpu.memory_space<vmem>>, vector<8x128xf32>,
      %cst_77 = arith.constant 0.000000e+00 : f32
      %282 = vector.broadcast %cst_77 : f32 to vector<8x128xf32>
      %c0_78 = arith.constant 0 : index
      %c0_79 = arith.constant 0 : index
      %283 = vector.load %arg5[%c0_78, %c0_79] : memref<8x128xf32, #tpu.memory_space<vmem>>, vector<8x128xf32>
      tpu.vector_store %arg5[%c0_78, %c0_79], %282 {strides = array<i32>} : memref<8x128xf32, #tpu.memory_space<vmem>>, vector<8x128xf32>,
    } else {
    }
    %c0 = arith.constant 0 : index
    %c0_1 = arith.constant 0 : index
    %3 = vector.load %arg2[%c0, %c0_1] : memref<128x512xf32, #tpu.memory_space<vmem>>, vector<128x512xf32>
    %c0_2 = arith.constant 0 : index
    %c0_3 = arith.constant 0 : index
    %4 = vector.load %arg4[%c0_2, %c0_3] : memref<8x128xf32, #tpu.memory_space<vmem>>, vector<8x128xf32>
    %c0_4 = arith.constant 0 : index
    %c0_5 = arith.constant 0 : index
    %5 = vector.load %arg5[%c0_4, %c0_5] : memref<8x128xf32, #tpu.memory_space<vmem>>, vector<8x128xf32>
    %c0_i32_6 = arith.constant 0 : i32
    %6 = arith.index_cast %c0_i32_6 : i32 to index
    %c0_7 = arith.constant 0 : index
    %c0_8 = arith.constant 0 : index
    %7 = vector.load %arg1[%6, %c0_7, %c0_8] : memref<8x8x512xf32, #tpu.memory_space<vmem>>, vector<1x8x512xf32>
    %8 = vector.shape_cast %7 : vector<1x8x512xf32> to vector<8x512xf32>
    %cst = arith.constant dense<0.000000e+00> : vector<8x512xf32>
    %9 = tpu.matmul %4, %3, %cst {dimension_numbers = #tpu.dot_dimension_numbers<[1], [0], [0], [1], [0, 0, 1, 1], [], []>} : vector<8x128xf32>, vector<128x512xf32>, vector<8x512xf32> -> vector<8x512xf32>
    %10 = arith.addf %8, %9 : vector<8x512xf32>
    %11 = vector.extract_strided_slice %10 {offsets = [0, 0], sizes = [8, 128], strides = [1, 1]} : vector<8x512xf32> to vector<8x128xf32>
    %12 = arith.negf %11 : vector<8x128xf32>
    %13 = math.exp %12 : vector<8x128xf32>
    %cst_9 = arith.constant 1.000000e+00 : f32
    %14 = vector.broadcast %cst_9 : f32 to vector<8x128xf32>
    %15 = arith.addf %14, %13 : vector<8x128xf32>
    %16 = arith.divf %14, %15 : vector<8x128xf32>
    %17 = vector.extract_strided_slice %10 {offsets = [0, 128], sizes = [8, 128], strides = [1, 1]} : vector<8x512xf32> to vector<8x128xf32>
    %18 = arith.negf %17 : vector<8x128xf32>
    %19 = math.exp %18 : vector<8x128xf32>
    %cst_10 = arith.constant 1.000000e+00 : f32
    %20 = vector.broadcast %cst_10 : f32 to vector<8x128xf32>
    %21 = arith.addf %20, %19 : vector<8x128xf32>
    %22 = arith.divf %20, %21 : vector<8x128xf32>
    %23 = vector.extract_strided_slice %10 {offsets = [0, 256], sizes = [8, 128], strides = [1, 1]} : vector<8x512xf32> to vector<8x128xf32>
    %24 = math.tanh %23 : vector<8x128xf32>
    %25 = vector.extract_strided_slice %10 {offsets = [0, 384], sizes = [8, 128], strides = [1, 1]} : vector<8x512xf32> to vector<8x128xf32>
    %26 = arith.negf %25 : vector<8x128xf32>
    %27 = math.exp %26 : vector<8x128xf32>
    %cst_11 = arith.constant 1.000000e+00 : f32
    %28 = vector.broadcast %cst_11 : f32 to vector<8x128xf32>
    %29 = arith.addf %28, %27 : vector<8x128xf32>
    %30 = arith.divf %28, %29 : vector<8x128xf32>
    %31 = arith.mulf %22, %5 : vector<8x128xf32>
    %32 = arith.mulf %16, %24 : vector<8x128xf32>
    %33 = arith.addf %31, %32 : vector<8x128xf32>
    %34 = math.tanh %33 : vector<8x128xf32>
    %35 = arith.mulf %30, %34 : vector<8x128xf32>
    %36 = arith.index_cast %c0_i32_6 : i32 to index
    %c0_12 = arith.constant 0 : index
    %c0_13 = arith.constant 0 : index
    %37 = vector.load %arg3[%36, %c0_12, %c0_13] : memref<8x8x128xf32, #tpu.memory_space<vmem>>, vector<1x8x128xf32>
    %38 = vector.shape_cast %37 : vector<1x8x128xf32> to vector<8x128xf32>
    %39 = vector.shape_cast %35 : vector<8x128xf32> to vector<1x8x128xf32>
    tpu.vector_store %arg3[%36, %c0_12, %c0_13], %39 {strides = array<i32>} : memref<8x8x128xf32, #tpu.memory_space<vmem>>, vector<1x8x128xf32>,
    %c1_i32 = arith.constant 1 : i32
    %40 = arith.index_cast %c1_i32 : i32 to index
    %c0_14 = arith.constant 0 : index
    %c0_15 = arith.constant 0 : index
    %41 = vector.load %arg1[%40, %c0_14, %c0_15] : memref<8x8x512xf32, #tpu.memory_space<vmem>>, vector<1x8x512xf32>
    %42 = vector.shape_cast %41 : vector<1x8x512xf32> to vector<8x512xf32>
    %cst_16 = arith.constant dense<0.000000e+00> : vector<8x512xf32>
    %43 = tpu.matmul %35, %3, %cst_16 {dimension_numbers = #tpu.dot_dimension_numbers<[1], [0], [0], [1], [0, 0, 1, 1], [], []>} : vector<8x128xf32>, vector<128x512xf32>, vector<8x512xf32> -> vector<8x512xf32>
    %44 = arith.addf %42, %43 : vector<8x512xf32>
    %45 = vector.extract_strided_slice %44 {offsets = [0, 0], sizes = [8, 128], strides = [1, 1]} : vector<8x512xf32> to vector<8x128xf32>
    %46 = arith.negf %45 : vector<8x128xf32>
    %47 = math.exp %46 : vector<8x128xf32>
    %cst_17 = arith.constant 1.000000e+00 : f32
    %48 = vector.broadcast %cst_17 : f32 to vector<8x128xf32>
    %49 = arith.addf %48, %47 : vector<8x128xf32>
    %50 = arith.divf %48, %49 : vector<8x128xf32>
    %51 = vector.extract_strided_slice %44 {offsets = [0, 128], sizes = [8, 128], strides = [1, 1]} : vector<8x512xf32> to vector<8x128xf32>
    %52 = arith.negf %51 : vector<8x128xf32>
    %53 = math.exp %52 : vector<8x128xf32>
    %cst_18 = arith.constant 1.000000e+00 : f32
    %54 = vector.broadcast %cst_18 : f32 to vector<8x128xf32>
    %55 = arith.addf %54, %53 : vector<8x128xf32>
    %56 = arith.divf %54, %55 : vector<8x128xf32>
    %57 = vector.extract_strided_slice %44 {offsets = [0, 256], sizes = [8, 128], strides = [1, 1]} : vector<8x512xf32> to vector<8x128xf32>
    %58 = math.tanh %57 : vector<8x128xf32>
    %59 = vector.extract_strided_slice %44 {offsets = [0, 384], sizes = [8, 128], strides = [1, 1]} : vector<8x512xf32> to vector<8x128xf32>
    %60 = arith.negf %59 : vector<8x128xf32>
    %61 = math.exp %60 : vector<8x128xf32>
    %cst_19 = arith.constant 1.000000e+00 : f32
    %62 = vector.broadcast %cst_19 : f32 to vector<8x128xf32>
    %63 = arith.addf %62, %61 : vector<8x128xf32>
    %64 = arith.divf %62, %63 : vector<8x128xf32>
    %65 = arith.mulf %56, %33 : vector<8x128xf32>
    %66 = arith.mulf %50, %58 : vector<8x128xf32>
    %67 = arith.addf %65, %66 : vector<8x128xf32>
    %68 = math.tanh %67 : vector<8x128xf32>
    %69 = arith.mulf %64, %68 : vector<8x128xf32>
    %70 = arith.index_cast %c1_i32 : i32 to index
    %c0_20 = arith.constant 0 : index
    %c0_21 = arith.constant 0 : index
    %71 = vector.load %arg3[%70, %c0_20, %c0_21] : memref<8x8x128xf32, #tpu.memory_space<vmem>>, vector<1x8x128xf32>
    %72 = vector.shape_cast %71 : vector<1x8x128xf32> to vector<8x128xf32>
    %73 = vector.shape_cast %69 : vector<8x128xf32> to vector<1x8x128xf32>
    tpu.vector_store %arg3[%70, %c0_20, %c0_21], %73 {strides = array<i32>} : memref<8x8x128xf32, #tpu.memory_space<vmem>>, vector<1x8x128xf32>,
    %c2_i32 = arith.constant 2 : i32
    %74 = arith.index_cast %c2_i32 : i32 to index
    %c0_22 = arith.constant 0 : index
    %c0_23 = arith.constant 0 : index
    %75 = vector.load %arg1[%74, %c0_22, %c0_23] : memref<8x8x512xf32, #tpu.memory_space<vmem>>, vector<1x8x512xf32>
    %76 = vector.shape_cast %75 : vector<1x8x512xf32> to vector<8x512xf32>
    %cst_24 = arith.constant dense<0.000000e+00> : vector<8x512xf32>
    %77 = tpu.matmul %69, %3, %cst_24 {dimension_numbers = #tpu.dot_dimension_numbers<[1], [0], [0], [1], [0, 0, 1, 1], [], []>} : vector<8x128xf32>, vector<128x512xf32>, vector<8x512xf32> -> vector<8x512xf32>
    %78 = arith.addf %76, %77 : vector<8x512xf32>
    %79 = vector.extract_strided_slice %78 {offsets = [0, 0], sizes = [8, 128], strides = [1, 1]} : vector<8x512xf32> to vector<8x128xf32>
    %80 = arith.negf %79 : vector<8x128xf32>
    %81 = math.exp %80 : vector<8x128xf32>
    %cst_25 = arith.constant 1.000000e+00 : f32
    %82 = vector.broadcast %cst_25 : f32 to vector<8x128xf32>
    %83 = arith.addf %82, %81 : vector<8x128xf32>
    %84 = arith.divf %82, %83 : vector<8x128xf32>
    %85 = vector.extract_strided_slice %78 {offsets = [0, 128], sizes = [8, 128], strides = [1, 1]} : vector<8x512xf32> to vector<8x128xf32>
    %86 = arith.negf %85 : vector<8x128xf32>
    %87 = math.exp %86 : vector<8x128xf32>
    %cst_26 = arith.constant 1.000000e+00 : f32
    %88 = vector.broadcast %cst_26 : f32 to vector<8x128xf32>
    %89 = arith.addf %88, %87 : vector<8x128xf32>
    %90 = arith.divf %88, %89 : vector<8x128xf32>
    %91 = vector.extract_strided_slice %78 {offsets = [0, 256], sizes = [8, 128], strides = [1, 1]} : vector<8x512xf32> to vector<8x128xf32>
    %92 = math.tanh %91 : vector<8x128xf32>
    %93 = vector.extract_strided_slice %78 {offsets = [0, 384], sizes = [8, 128], strides = [1, 1]} : vector<8x512xf32> to vector<8x128xf32>
    %94 = arith.negf %93 : vector<8x128xf32>
    %95 = math.exp %94 : vector<8x128xf32>
    %cst_27 = arith.constant 1.000000e+00 : f32
    %96 = vector.broadcast %cst_27 : f32 to vector<8x128xf32>
    %97 = arith.addf %96, %95 : vector<8x128xf32>
    %98 = arith.divf %96, %97 : vector<8x128xf32>
    %99 = arith.mulf %90, %67 : vector<8x128xf32>
    %100 = arith.mulf %84, %92 : vector<8x128xf32>
    %101 = arith.addf %99, %100 : vector<8x128xf32>
    %102 = math.tanh %101 : vector<8x128xf32>
    %103 = arith.mulf %98, %102 : vector<8x128xf32>
    %104 = arith.index_cast %c2_i32 : i32 to index
    %c0_28 = arith.constant 0 : index
    %c0_29 = arith.constant 0 : index
    %105 = vector.load %arg3[%104, %c0_28, %c0_29] : memref<8x8x128xf32, #tpu.memory_space<vmem>>, vector<1x8x128xf32>
    %106 = vector.shape_cast %105 : vector<1x8x128xf32> to vector<8x128xf32>
    %107 = vector.shape_cast %103 : vector<8x128xf32> to vector<1x8x128xf32>
    tpu.vector_store %arg3[%104, %c0_28, %c0_29], %107 {strides = array<i32>} : memref<8x8x128xf32, #tpu.memory_space<vmem>>, vector<1x8x128xf32>,
    %c3_i32 = arith.constant 3 : i32
    %108 = arith.index_cast %c3_i32 : i32 to index
    %c0_30 = arith.constant 0 : index
    %c0_31 = arith.constant 0 : index
    %109 = vector.load %arg1[%108, %c0_30, %c0_31] : memref<8x8x512xf32, #tpu.memory_space<vmem>>, vector<1x8x512xf32>
    %110 = vector.shape_cast %109 : vector<1x8x512xf32> to vector<8x512xf32>
    %cst_32 = arith.constant dense<0.000000e+00> : vector<8x512xf32>
    %111 = tpu.matmul %103, %3, %cst_32 {dimension_numbers = #tpu.dot_dimension_numbers<[1], [0], [0], [1], [0, 0, 1, 1], [], []>} : vector<8x128xf32>, vector<128x512xf32>, vector<8x512xf32> -> vector<8x512xf32>
    %112 = arith.addf %110, %111 : vector<8x512xf32>
    %113 = vector.extract_strided_slice %112 {offsets = [0, 0], sizes = [8, 128], strides = [1, 1]} : vector<8x512xf32> to vector<8x128xf32>
    %114 = arith.negf %113 : vector<8x128xf32>
    %115 = math.exp %114 : vector<8x128xf32>
    %cst_33 = arith.constant 1.000000e+00 : f32
    %116 = vector.broadcast %cst_33 : f32 to vector<8x128xf32>
    %117 = arith.addf %116, %115 : vector<8x128xf32>
    %118 = arith.divf %116, %117 : vector<8x128xf32>
    %119 = vector.extract_strided_slice %112 {offsets = [0, 128], sizes = [8, 128], strides = [1, 1]} : vector<8x512xf32> to vector<8x128xf32>
    %120 = arith.negf %119 : vector<8x128xf32>
    %121 = math.exp %120 : vector<8x128xf32>
    %cst_34 = arith.constant 1.000000e+00 : f32
    %122 = vector.broadcast %cst_34 : f32 to vector<8x128xf32>
    %123 = arith.addf %122, %121 : vector<8x128xf32>
    %124 = arith.divf %122, %123 : vector<8x128xf32>
    %125 = vector.extract_strided_slice %112 {offsets = [0, 256], sizes = [8, 128], strides = [1, 1]} : vector<8x512xf32> to vector<8x128xf32>
    %126 = math.tanh %125 : vector<8x128xf32>
    %127 = vector.extract_strided_slice %112 {offsets = [0, 384], sizes = [8, 128], strides = [1, 1]} : vector<8x512xf32> to vector<8x128xf32>
    %128 = arith.negf %127 : vector<8x128xf32>
    %129 = math.exp %128 : vector<8x128xf32>
    %cst_35 = arith.constant 1.000000e+00 : f32
    %130 = vector.broadcast %cst_35 : f32 to vector<8x128xf32>
    %131 = arith.addf %130, %129 : vector<8x128xf32>
    %132 = arith.divf %130, %131 : vector<8x128xf32>
    %133 = arith.mulf %124, %101 : vector<8x128xf32>
    %134 = arith.mulf %118, %126 : vector<8x128xf32>
    %135 = arith.addf %133, %134 : vector<8x128xf32>
    %136 = math.tanh %135 : vector<8x128xf32>
    %137 = arith.mulf %132, %136 : vector<8x128xf32>
    %138 = arith.index_cast %c3_i32 : i32 to index
    %c0_36 = arith.constant 0 : index
    %c0_37 = arith.constant 0 : index
    %139 = vector.load %arg3[%138, %c0_36, %c0_37] : memref<8x8x128xf32, #tpu.memory_space<vmem>>, vector<1x8x128xf32>
    %140 = vector.shape_cast %139 : vector<1x8x128xf32> to vector<8x128xf32>
    %141 = vector.shape_cast %137 : vector<8x128xf32> to vector<1x8x128xf32>
    tpu.vector_store %arg3[%138, %c0_36, %c0_37], %141 {strides = array<i32>} : memref<8x8x128xf32, #tpu.memory_space<vmem>>, vector<1x8x128xf32>,
    %c4_i32 = arith.constant 4 : i32
    %142 = arith.index_cast %c4_i32 : i32 to index
    %c0_38 = arith.constant 0 : index
    %c0_39 = arith.constant 0 : index
    %143 = vector.load %arg1[%142, %c0_38, %c0_39] : memref<8x8x512xf32, #tpu.memory_space<vmem>>, vector<1x8x512xf32>
    %144 = vector.shape_cast %143 : vector<1x8x512xf32> to vector<8x512xf32>
    %cst_40 = arith.constant dense<0.000000e+00> : vector<8x512xf32>
    %145 = tpu.matmul %137, %3, %cst_40 {dimension_numbers = #tpu.dot_dimension_numbers<[1], [0], [0], [1], [0, 0, 1, 1], [], []>} : vector<8x128xf32>, vector<128x512xf32>, vector<8x512xf32> -> vector<8x512xf32>
    %146 = arith.addf %144, %145 : vector<8x512xf32>
    %147 = vector.extract_strided_slice %146 {offsets = [0, 0], sizes = [8, 128], strides = [1, 1]} : vector<8x512xf32> to vector<8x128xf32>
    %148 = arith.negf %147 : vector<8x128xf32>
    %149 = math.exp %148 : vector<8x128xf32>
    %cst_41 = arith.constant 1.000000e+00 : f32
    %150 = vector.broadcast %cst_41 : f32 to vector<8x128xf32>
    %151 = arith.addf %150, %149 : vector<8x128xf32>
    %152 = arith.divf %150, %151 : vector<8x128xf32>
    %153 = vector.extract_strided_slice %146 {offsets = [0, 128], sizes = [8, 128], strides = [1, 1]} : vector<8x512xf32> to vector<8x128xf32>
    %154 = arith.negf %153 : vector<8x128xf32>
    %155 = math.exp %154 : vector<8x128xf32>
    %cst_42 = arith.constant 1.000000e+00 : f32
    %156 = vector.broadcast %cst_42 : f32 to vector<8x128xf32>
    %157 = arith.addf %156, %155 : vector<8x128xf32>
    %158 = arith.divf %156, %157 : vector<8x128xf32>
    %159 = vector.extract_strided_slice %146 {offsets = [0, 256], sizes = [8, 128], strides = [1, 1]} : vector<8x512xf32> to vector<8x128xf32>
    %160 = math.tanh %159 : vector<8x128xf32>
    %161 = vector.extract_strided_slice %146 {offsets = [0, 384], sizes = [8, 128], strides = [1, 1]} : vector<8x512xf32> to vector<8x128xf32>
    %162 = arith.negf %161 : vector<8x128xf32>
    %163 = math.exp %162 : vector<8x128xf32>
    %cst_43 = arith.constant 1.000000e+00 : f32
    %164 = vector.broadcast %cst_43 : f32 to vector<8x128xf32>
    %165 = arith.addf %164, %163 : vector<8x128xf32>
    %166 = arith.divf %164, %165 : vector<8x128xf32>
    %167 = arith.mulf %158, %135 : vector<8x128xf32>
    %168 = arith.mulf %152, %160 : vector<8x128xf32>
    %169 = arith.addf %167, %168 : vector<8x128xf32>
    %170 = math.tanh %169 : vector<8x128xf32>
    %171 = arith.mulf %166, %170 : vector<8x128xf32>
    %172 = arith.index_cast %c4_i32 : i32 to index
    %c0_44 = arith.constant 0 : index
    %c0_45 = arith.constant 0 : index
    %173 = vector.load %arg3[%172, %c0_44, %c0_45] : memref<8x8x128xf32, #tpu.memory_space<vmem>>, vector<1x8x128xf32>
    %174 = vector.shape_cast %173 : vector<1x8x128xf32> to vector<8x128xf32>
    %175 = vector.shape_cast %171 : vector<8x128xf32> to vector<1x8x128xf32>
    tpu.vector_store %arg3[%172, %c0_44, %c0_45], %175 {strides = array<i32>} : memref<8x8x128xf32, #tpu.memory_space<vmem>>, vector<1x8x128xf32>,
    %c5_i32 = arith.constant 5 : i32
    %176 = arith.index_cast %c5_i32 : i32 to index
    %c0_46 = arith.constant 0 : index
    %c0_47 = arith.constant 0 : index
    %177 = vector.load %arg1[%176, %c0_46, %c0_47] : memref<8x8x512xf32, #tpu.memory_space<vmem>>, vector<1x8x512xf32>
    %178 = vector.shape_cast %177 : vector<1x8x512xf32> to vector<8x512xf32>
    %cst_48 = arith.constant dense<0.000000e+00> : vector<8x512xf32>
    %179 = tpu.matmul %171, %3, %cst_48 {dimension_numbers = #tpu.dot_dimension_numbers<[1], [0], [0], [1], [0, 0, 1, 1], [], []>} : vector<8x128xf32>, vector<128x512xf32>, vector<8x512xf32> -> vector<8x512xf32>
    %180 = arith.addf %178, %179 : vector<8x512xf32>
    %181 = vector.extract_strided_slice %180 {offsets = [0, 0], sizes = [8, 128], strides = [1, 1]} : vector<8x512xf32> to vector<8x128xf32>
    %182 = arith.negf %181 : vector<8x128xf32>
    %183 = math.exp %182 : vector<8x128xf32>
    %cst_49 = arith.constant 1.000000e+00 : f32
    %184 = vector.broadcast %cst_49 : f32 to vector<8x128xf32>
    %185 = arith.addf %184, %183 : vector<8x128xf32>
    %186 = arith.divf %184, %185 : vector<8x128xf32>
    %187 = vector.extract_strided_slice %180 {offsets = [0, 128], sizes = [8, 128], strides = [1, 1]} : vector<8x512xf32> to vector<8x128xf32>
    %188 = arith.negf %187 : vector<8x128xf32>
    %189 = math.exp %188 : vector<8x128xf32>
    %cst_50 = arith.constant 1.000000e+00 : f32
    %190 = vector.broadcast %cst_50 : f32 to vector<8x128xf32>
    %191 = arith.addf %190, %189 : vector<8x128xf32>
    %192 = arith.divf %190, %191 : vector<8x128xf32>
    %193 = vector.extract_strided_slice %180 {offsets = [0, 256], sizes = [8, 128], strides = [1, 1]} : vector<8x512xf32> to vector<8x128xf32>
    %194 = math.tanh %193 : vector<8x128xf32>
    %195 = vector.extract_strided_slice %180 {offsets = [0, 384], sizes = [8, 128], strides = [1, 1]} : vector<8x512xf32> to vector<8x128xf32>
    %196 = arith.negf %195 : vector<8x128xf32>
    %197 = math.exp %196 : vector<8x128xf32>
    %cst_51 = arith.constant 1.000000e+00 : f32
    %198 = vector.broadcast %cst_51 : f32 to vector<8x128xf32>
    %199 = arith.addf %198, %197 : vector<8x128xf32>
    %200 = arith.divf %198, %199 : vector<8x128xf32>
    %201 = arith.mulf %192, %169 : vector<8x128xf32>
    %202 = arith.mulf %186, %194 : vector<8x128xf32>
    %203 = arith.addf %201, %202 : vector<8x128xf32>
    %204 = math.tanh %203 : vector<8x128xf32>
    %205 = arith.mulf %200, %204 : vector<8x128xf32>
    %206 = arith.index_cast %c5_i32 : i32 to index
    %c0_52 = arith.constant 0 : index
    %c0_53 = arith.constant 0 : index
    %207 = vector.load %arg3[%206, %c0_52, %c0_53] : memref<8x8x128xf32, #tpu.memory_space<vmem>>, vector<1x8x128xf32>
    %208 = vector.shape_cast %207 : vector<1x8x128xf32> to vector<8x128xf32>
    %209 = vector.shape_cast %205 : vector<8x128xf32> to vector<1x8x128xf32>
    tpu.vector_store %arg3[%206, %c0_52, %c0_53], %209 {strides = array<i32>} : memref<8x8x128xf32, #tpu.memory_space<vmem>>, vector<1x8x128xf32>,
    %c6_i32 = arith.constant 6 : i32
    %210 = arith.index_cast %c6_i32 : i32 to index
    %c0_54 = arith.constant 0 : index
    %c0_55 = arith.constant 0 : index
    %211 = vector.load %arg1[%210, %c0_54, %c0_55] : memref<8x8x512xf32, #tpu.memory_space<vmem>>, vector<1x8x512xf32>
    %212 = vector.shape_cast %211 : vector<1x8x512xf32> to vector<8x512xf32>
    %cst_56 = arith.constant dense<0.000000e+00> : vector<8x512xf32>
    %213 = tpu.matmul %205, %3, %cst_56 {dimension_numbers = #tpu.dot_dimension_numbers<[1], [0], [0], [1], [0, 0, 1, 1], [], []>} : vector<8x128xf32>, vector<128x512xf32>, vector<8x512xf32> -> vector<8x512xf32>
    %214 = arith.addf %212, %213 : vector<8x512xf32>
    %215 = vector.extract_strided_slice %214 {offsets = [0, 0], sizes = [8, 128], strides = [1, 1]} : vector<8x512xf32> to vector<8x128xf32>
    %216 = arith.negf %215 : vector<8x128xf32>
    %217 = math.exp %216 : vector<8x128xf32>
    %cst_57 = arith.constant 1.000000e+00 : f32
    %218 = vector.broadcast %cst_57 : f32 to vector<8x128xf32>
    %219 = arith.addf %218, %217 : vector<8x128xf32>
    %220 = arith.divf %218, %219 : vector<8x128xf32>
    %221 = vector.extract_strided_slice %214 {offsets = [0, 128], sizes = [8, 128], strides = [1, 1]} : vector<8x512xf32> to vector<8x128xf32>
    %222 = arith.negf %221 : vector<8x128xf32>
    %223 = math.exp %222 : vector<8x128xf32>
    %cst_58 = arith.constant 1.000000e+00 : f32
    %224 = vector.broadcast %cst_58 : f32 to vector<8x128xf32>
    %225 = arith.addf %224, %223 : vector<8x128xf32>
    %226 = arith.divf %224, %225 : vector<8x128xf32>
    %227 = vector.extract_strided_slice %214 {offsets = [0, 256], sizes = [8, 128], strides = [1, 1]} : vector<8x512xf32> to vector<8x128xf32>
    %228 = math.tanh %227 : vector<8x128xf32>
    %229 = vector.extract_strided_slice %214 {offsets = [0, 384], sizes = [8, 128], strides = [1, 1]} : vector<8x512xf32> to vector<8x128xf32>
    %230 = arith.negf %229 : vector<8x128xf32>
    %231 = math.exp %230 : vector<8x128xf32>
    %cst_59 = arith.constant 1.000000e+00 : f32
    %232 = vector.broadcast %cst_59 : f32 to vector<8x128xf32>
    %233 = arith.addf %232, %231 : vector<8x128xf32>
    %234 = arith.divf %232, %233 : vector<8x128xf32>
    %235 = arith.mulf %226, %203 : vector<8x128xf32>
    %236 = arith.mulf %220, %228 : vector<8x128xf32>
    %237 = arith.addf %235, %236 : vector<8x128xf32>
    %238 = math.tanh %237 : vector<8x128xf32>
    %239 = arith.mulf %234, %238 : vector<8x128xf32>
    %240 = arith.index_cast %c6_i32 : i32 to index
    %c0_60 = arith.constant 0 : index
    %c0_61 = arith.constant 0 : index
    %241 = vector.load %arg3[%240, %c0_60, %c0_61] : memref<8x8x128xf32, #tpu.memory_space<vmem>>, vector<1x8x128xf32>
    %242 = vector.shape_cast %241 : vector<1x8x128xf32> to vector<8x128xf32>
    %243 = vector.shape_cast %239 : vector<8x128xf32> to vector<1x8x128xf32>
    tpu.vector_store %arg3[%240, %c0_60, %c0_61], %243 {strides = array<i32>} : memref<8x8x128xf32, #tpu.memory_space<vmem>>, vector<1x8x128xf32>,
    %c7_i32 = arith.constant 7 : i32
    %244 = arith.index_cast %c7_i32 : i32 to index
    %c0_62 = arith.constant 0 : index
    %c0_63 = arith.constant 0 : index
    %245 = vector.load %arg1[%244, %c0_62, %c0_63] : memref<8x8x512xf32, #tpu.memory_space<vmem>>, vector<1x8x512xf32>
    %246 = vector.shape_cast %245 : vector<1x8x512xf32> to vector<8x512xf32>
    %cst_64 = arith.constant dense<0.000000e+00> : vector<8x512xf32>
    %247 = tpu.matmul %239, %3, %cst_64 {dimension_numbers = #tpu.dot_dimension_numbers<[1], [0], [0], [1], [0, 0, 1, 1], [], []>} : vector<8x128xf32>, vector<128x512xf32>, vector<8x512xf32> -> vector<8x512xf32>
    %248 = arith.addf %246, %247 : vector<8x512xf32>
    %249 = vector.extract_strided_slice %248 {offsets = [0, 0], sizes = [8, 128], strides = [1, 1]} : vector<8x512xf32> to vector<8x128xf32>
    %250 = arith.negf %249 : vector<8x128xf32>
    %251 = math.exp %250 : vector<8x128xf32>
    %cst_65 = arith.constant 1.000000e+00 : f32
    %252 = vector.broadcast %cst_65 : f32 to vector<8x128xf32>
    %253 = arith.addf %252, %251 : vector<8x128xf32>
    %254 = arith.divf %252, %253 : vector<8x128xf32>
    %255 = vector.extract_strided_slice %248 {offsets = [0, 128], sizes = [8, 128], strides = [1, 1]} : vector<8x512xf32> to vector<8x128xf32>
    %256 = arith.negf %255 : vector<8x128xf32>
    %257 = math.exp %256 : vector<8x128xf32>
    %cst_66 = arith.constant 1.000000e+00 : f32
    %258 = vector.broadcast %cst_66 : f32 to vector<8x128xf32>
    %259 = arith.addf %258, %257 : vector<8x128xf32>
    %260 = arith.divf %258, %259 : vector<8x128xf32>
    %261 = vector.extract_strided_slice %248 {offsets = [0, 256], sizes = [8, 128], strides = [1, 1]} : vector<8x512xf32> to vector<8x128xf32>
    %262 = math.tanh %261 : vector<8x128xf32>
    %263 = vector.extract_strided_slice %248 {offsets = [0, 384], sizes = [8, 128], strides = [1, 1]} : vector<8x512xf32> to vector<8x128xf32>
    %264 = arith.negf %263 : vector<8x128xf32>
    %265 = math.exp %264 : vector<8x128xf32>
    %cst_67 = arith.constant 1.000000e+00 : f32
    %266 = vector.broadcast %cst_67 : f32 to vector<8x128xf32>
    %267 = arith.addf %266, %265 : vector<8x128xf32>
    %268 = arith.divf %266, %267 : vector<8x128xf32>
    %269 = arith.mulf %260, %237 : vector<8x128xf32>
    %270 = arith.mulf %254, %262 : vector<8x128xf32>
    %271 = arith.addf %269, %270 : vector<8x128xf32>
    %272 = math.tanh %271 : vector<8x128xf32>
    %273 = arith.mulf %268, %272 : vector<8x128xf32>
    %274 = arith.index_cast %c7_i32 : i32 to index
    %c0_68 = arith.constant 0 : index
    %c0_69 = arith.constant 0 : index
    %275 = vector.load %arg3[%274, %c0_68, %c0_69] : memref<8x8x128xf32, #tpu.memory_space<vmem>>, vector<1x8x128xf32>
    %276 = vector.shape_cast %275 : vector<1x8x128xf32> to vector<8x128xf32>
    %277 = vector.shape_cast %273 : vector<8x128xf32> to vector<1x8x128xf32>
    tpu.vector_store %arg3[%274, %c0_68, %c0_69], %277 {strides = array<i32>} : memref<8x8x128xf32, #tpu.memory_space<vmem>>, vector<1x8x128xf32>,
    %c8_i32 = arith.constant 8 : i32
    %c0_70 = arith.constant 0 : index
    %c0_71 = arith.constant 0 : index
    %278 = vector.load %arg4[%c0_70, %c0_71] : memref<8x128xf32, #tpu.memory_space<vmem>>, vector<8x128xf32>
    tpu.vector_store %arg4[%c0_70, %c0_71], %273 {strides = array<i32>} : memref<8x128xf32, #tpu.memory_space<vmem>>, vector<8x128xf32>,
    %c0_72 = arith.constant 0 : index
    %c0_73 = arith.constant 0 : index
    %279 = vector.load %arg5[%c0_72, %c0_73] : memref<8x128xf32, #tpu.memory_space<vmem>>, vector<8x128xf32>
    tpu.vector_store %arg5[%c0_72, %c0_73], %271 {strides = array<i32>} : memref<8x128xf32, #tpu.memory_space<vmem>>, vector<8x128xf32>,
    return
  }
  func.func @transform_0(%arg0: i32) -> (i32, i32, i32) {
    %c0_i32 = arith.constant 0 : i32
    %c0_i32_0 = arith.constant 0 : i32
    %c0_i32_1 = arith.constant 0 : i32
    return %arg0, %c0_i32, %c0_i32_0 : i32, i32, i32
  }
  func.func @transform_1(%arg0: i32) -> (i32, i32) {
    %c0_i32 = arith.constant 0 : i32
    %c0_i32_0 = arith.constant 0 : i32
    %c0_i32_1 = arith.constant 0 : i32
    return %c0_i32, %c0_i32_0 : i32, i32
  }
  func.func @transform_2(%arg0: i32) -> (i32, i32, i32) {
    %c0_i32 = arith.constant 0 : i32
    %c0_i32_0 = arith.constant 0 : i32
    %c0_i32_1 = arith.constant 0 : i32
    return %arg0, %c0_i32, %c0_i32_0 : i32, i32, i32
  }
}

module attributes {stable_mosaic.version = 11 : i64} {
  func.func @_proj_kernel(%arg0: i32, %arg1: memref<64x128xf32, #tpu.memory_space<vmem>>, %arg2: memref<128x128xf32, #tpu.memory_space<vmem>>, %arg3: memref<1x128xf32, #tpu.memory_space<vmem>>, %arg4: memref<64x128xf32, #tpu.memory_space<vmem>>) attributes {dimension_semantics = [#tpu.dimension_semantics<parallel>], iteration_bounds = array<i64: 1>, scalar_prefetch = 0 : i64, scratch_operands = 0 : i64, tpu.core_type = #tpu.core_type<tc>, window_params = [{transform_indices = @transform_0, window_bounds = array<i64: 64, 128>}, {pipeline_mode = #tpu.pipeline_mode<synchronous>, transform_indices = @transform_1, window_bounds = array<i64: 128, 128>}, {pipeline_mode = #tpu.pipeline_mode<synchronous>, transform_indices = @transform_2, window_bounds = array<i64: 1, 128>}, {transform_indices = @transform_3, window_bounds = array<i64: 64, 128>}]} {
    %c0 = arith.constant 0 : index
    %c0_0 = arith.constant 0 : index
    %0 = vector.load %arg1[%c0, %c0_0] : memref<64x128xf32, #tpu.memory_space<vmem>>, vector<64x128xf32>
    %c0_1 = arith.constant 0 : index
    %c0_2 = arith.constant 0 : index
    %1 = vector.load %arg2[%c0_1, %c0_2] : memref<128x128xf32, #tpu.memory_space<vmem>>, vector<128x128xf32>
    %cst = arith.constant dense<0.000000e+00> : vector<64x128xf32>
    %2 = tpu.matmul %0, %1, %cst {dimension_numbers = #tpu.dot_dimension_numbers<[1], [0], [0], [1], [0, 0, 1, 1], [], []>} : vector<64x128xf32>, vector<128x128xf32>, vector<64x128xf32> -> vector<64x128xf32>
    %c0_3 = arith.constant 0 : index
    %c0_4 = arith.constant 0 : index
    %3 = vector.load %arg3[%c0_3, %c0_4] : memref<1x128xf32, #tpu.memory_space<vmem>>, vector<1x128xf32>
    %4 = vector.broadcast %3 : vector<1x128xf32> to vector<64x128xf32>
    %5 = arith.addf %2, %4 : vector<64x128xf32>
    %6 = arith.negf %5 : vector<64x128xf32>
    %7 = math.exp %6 : vector<64x128xf32>
    %cst_5 = arith.constant 1.000000e+00 : f32
    %8 = vector.broadcast %cst_5 : f32 to vector<64x128xf32>
    %9 = arith.addf %8, %7 : vector<64x128xf32>
    %10 = arith.divf %8, %9 : vector<64x128xf32>
    %c0_6 = arith.constant 0 : index
    %c0_7 = arith.constant 0 : index
    %11 = vector.load %arg4[%c0_6, %c0_7] : memref<64x128xf32, #tpu.memory_space<vmem>>, vector<64x128xf32>
    tpu.vector_store %arg4[%c0_6, %c0_7], %10 {strides = array<i32>} : memref<64x128xf32, #tpu.memory_space<vmem>>, vector<64x128xf32>,
    return
  }
  func.func @transform_0(%arg0: i32) -> (i32, i32) {
    %c0_i32 = arith.constant 0 : i32
    %c0_i32_0 = arith.constant 0 : i32
    return %arg0, %c0_i32 : i32, i32
  }
  func.func @transform_1(%arg0: i32) -> (i32, i32) {
    %c0_i32 = arith.constant 0 : i32
    %c0_i32_0 = arith.constant 0 : i32
    %c0_i32_1 = arith.constant 0 : i32
    return %c0_i32, %c0_i32_0 : i32, i32
  }
  func.func @transform_2(%arg0: i32) -> (i32, i32) {
    %c0_i32 = arith.constant 0 : i32
    %c0_i32_0 = arith.constant 0 : i32
    %c0_i32_1 = arith.constant 0 : i32
    return %c0_i32, %c0_i32_0 : i32, i32
  }
  func.func @transform_3(%arg0: i32) -> (i32, i32) {
    %c0_i32 = arith.constant 0 : i32
    %c0_i32_0 = arith.constant 0 : i32
    return %arg0, %c0_i32 : i32, i32
  }
}

</mosaic_0001>

<llo_original>
// kernel: dkt_forward.5
$region0: #{dkt_forward.5}
  #allocation0 [shape = 'u32[]', space=smem, size = 0x4, offset = 0x4, fixed_abs, tag = 'smem constant byte address 0x4 - core index']
  #allocation1 [shape = 'u32[144,128]{1,0:T(1,128)}', space=vmem, size = 0x12000, scoped, tag = 'internal scratch']
  %s0 = inlined_call_operand.vmem [shape: f32[64,128], index: 0, kind: input, shape index: {}]
  %s1 = inlined_call_operand.vmem [shape: f32[128,128], index: 1, kind: input, shape index: {}]
  %s2 = inlined_call_operand.vmem [shape: f32[1,128], index: 2, kind: input, shape index: {}]
  %s3 = inlined_call_operand.vmem [shape: f32[64,128], index: 3, kind: output, shape index: {}]
  %s4 = sld [smem:[#allocation0]]
  $region22: #{dkt_forward.5} parent=0
    _
  %s6 = ssub.s32 1, %s4
  %s7 = scalar_select 0, %s6, %s4
  // Predicated region
  $region2: #{dkt_forward.5} parent=0 // pred_check
    _
  $region3: #{dkt_forward.5} parent=0 // pred_check_branch
    %9 = sbr.rel (0) target = $region5
  $region4: #{dkt_forward.5} parent=0 // pred_region
    _
  $region5: #{dkt_forward.5} parent=0 // pred_fallthru
    _
  // Predicated region
  $region6: #{dkt_forward.5} parent=0 // pred_check
    _
  $region7: #{dkt_forward.5} parent=0 // pred_check_branch
    %11 = sbr.rel (0) target = $region9
  $region8: #{dkt_forward.5} parent=0 // pred_region
    _
  $region9: #{dkt_forward.5} parent=0 // pred_fallthru
    _
  // Predicated region
  $region10: #{dkt_forward.5} parent=0 // pred_check
    _
  $region11: #{dkt_forward.5} parent=0 // pred_check_branch
    %13 = sbr.rel (0) target = $region13
  $region12: #{dkt_forward.5} parent=0 // pred_region
    _
  $region13: #{dkt_forward.5} parent=0 // pred_fallthru
    _
  %v14 = vld [vmem:[%s0] sm:$0xff]
  %v15 = vld [vmem:[%s0 + $0x8] sm:$0xff]
  %v16 = vld [vmem:[%s0 + $0x10] sm:$0xff]
  %v17 = vld [vmem:[%s0 + $0x18] sm:$0xff]
  %v18 = vld [vmem:[%s0 + $0x20] sm:$0xff]
  %v19 = vld [vmem:[%s0 + $0x28] sm:$0xff]
  %v20 = vld [vmem:[%s0 + $0x30] sm:$0xff]
  %v21 = vld [vmem:[%s0 + $0x38] sm:$0xff]
  %v22 = vld [vmem:[%s1] sm:$0xff]
  %v23 = vld [vmem:[%s1 + $0x8] sm:$0xff]
  %v24 = vld [vmem:[%s1 + $0x10] sm:$0xff]
  %v25 = vld [vmem:[%s1 + $0x18] sm:$0xff]
  %v26 = vld [vmem:[%s1 + $0x20] sm:$0xff]
  %v27 = vld [vmem:[%s1 + $0x28] sm:$0xff]
  %v28 = vld [vmem:[%s1 + $0x30] sm:$0xff]
  %v29 = vld [vmem:[%s1 + $0x38] sm:$0xff]
  %v30 = vld [vmem:[%s1 + $0x40] sm:$0xff]
  %v31 = vld [vmem:[%s1 + $0x48] sm:$0xff]
  %v32 = vld [vmem:[%s1 + $0x50] sm:$0xff]
  %v33 = vld [vmem:[%s1 + $0x58] sm:$0xff]
  %v34 = vld [vmem:[%s1 + $0x60] sm:$0xff]
  %v35 = vld [vmem:[%s1 + $0x68] sm:$0xff]
  %v36 = vld [vmem:[%s1 + $0x70] sm:$0xff]
  %v37 = vld [vmem:[%s1 + $0x78] sm:$0xff]
  %v38 = vld [vmem:[%s2] sm:$0x1]
  %v40 = vlaneseq
  %v41 = vshrl.u32 %v40, 7
  %v42 = vsub.s32 0, %v41
  %v43 = vrot.slane %v38, %v42
  %45 = vmatprep.subr.mxu0 0.0
  %46 = vmatpush1.msra.mxu0 %v37
  %47 = vmatprep.subr.mxu0 0.0
  %48 = vmatpush1.msra.mxu0 %v36
  %49 = vmatprep.subr.mxu0 0.0
  %50 = vmatpush1.msra.mxu0 %v35
  %51 = vmatprep.subr.mxu0 0.0
  %52 = vmatpush1.msra.mxu0 %v34
  %53 = vmatprep.subr.mxu0 0.0
  %54 = vmatpush1.msra.mxu0 %v33
  %55 = vmatprep.subr.mxu0 0.0
  %56 = vmatpush1.msra.mxu0 %v32
  %57 = vmatprep.subr.mxu0 0.0
  %58 = vmatpush1.msra.mxu0 %v31
  %59 = vmatprep.subr.mxu0 0.0
  %60 = vmatpush1.msra.mxu0 %v30
  %61 = vmatprep.subr.mxu0 0.0
  %62 = vmatpush1.msra.mxu0 %v29
  %63 = vmatprep.subr.mxu0 0.0
  %64 = vmatpush1.msra.mxu0 %v28
  %65 = vmatprep.subr.mxu0 0.0
  %66 = vmatpush1.msra.mxu0 %v27
  %67 = vmatprep.subr.mxu0 0.0
  %68 = vmatpush1.msra.mxu0 %v26
  %69 = vmatprep.subr.mxu0 0.0
  %70 = vmatpush1.msra.mxu0 %v25
  %71 = vmatprep.subr.mxu0 0.0
  %72 = vmatpush1.msra.mxu0 %v24
  %73 = vmatprep.subr.mxu0 0.0
  %74 = vmatpush1.msra.mxu0 %v23
  %75 = vmatprep.subr.mxu0 0.0
  %76 = vmatpush1.msra.mxu0 %v22
  %77 = vmatprep.subr.mxu0 0.0
  %78 = vmatpush2.msra.mxu0 0.0
  %79 = vmatprep.subr.mxu0 0.0
  %80 = vmatpush2.msra.mxu0 0.0
  %81 = vmatprep.subr.mxu0 0.0
  %82 = vmatpush2.msra.mxu0 0.0
  %83 = vmatprep.subr.mxu0 0.0
  %84 = vmatpush2.msra.mxu0 0.0
  %85 = vmatprep.subr.mxu0 0.0
  %86 = vmatpush2.msra.mxu0 0.0
  %87 = vmatprep.subr.mxu0 0.0
  %88 = vmatpush2.msra.mxu0 0.0
  %89 = vmatprep.subr.mxu0 0.0
  %90 = vmatpush2.msra.mxu0 0.0
  %91 = vmatprep.subr.mxu0 0.0
  %92 = vmatpush2.msra.mxu0 0.0
  %93 = vmatprep.subr.mxu0 0.0
  %94 = vmatpush2.msra.mxu0 0.0
  %95 = vmatprep.subr.mxu0 0.0
  %96 = vmatpush2.msra.mxu0 0.0
  %97 = vmatprep.subr.mxu0 0.0
  %98 = vmatpush2.msra.mxu0 0.0
  %99 = vmatprep.subr.mxu0 0.0
  %100 = vmatpush2.msra.mxu0 0.0
  %101 = vmatprep.subr.mxu0 0.0
  %102 = vmatpush2.msra.mxu0 0.0
  %103 = vmatprep.subr.mxu0 0.0
  %104 = vmatpush2.msra.mxu0 0.0
  %105 = vmatprep.subr.mxu0 0.0
  %106 = vmatpush2.msra.mxu0 0.0
  %107 = vmatprep.subr.mxu0 0.0
  %108 = vmatpush2.msra.mxu0 0.0
  %109 = vmatprep.mubr.f32.mxu0 0.0
  %110 = vmatmul.mubr.f32.gmra.mxu0 %v14
  %v111 = vpop.f32.mrf.mxu0
  %v112 = vadd.f32 %v43, %v111
  %v113 = vpop.f32.mrf.mxu0
  %114 = vmatprep.mubr.f32.mxu0 0.0
  %115 = vmatmul.mubr.f32.gmra.mxu0 %v15
  %v116 = vpop.f32.mrf.mxu0
  %v117 = vadd.f32 %v43, %v116
  %v118 = vpop.f32.mrf.mxu0
  %119 = vmatprep.mubr.f32.mxu0 0.0
  %120 = vmatmul.mubr.f32.gmra.mxu0 %v16
  %v121 = vpop.f32.mrf.mxu0
  %v122 = vadd.f32 %v43, %v121
  %v123 = vpop.f32.mrf.mxu0
  %124 = vmatprep.mubr.f32.mxu0 0.0
  %125 = vmatmul.mubr.f32.gmra.mxu0 %v17
  %v126 = vpop.f32.mrf.mxu0
  %v127 = vadd.f32 %v43, %v126
  %v128 = vpop.f32.mrf.mxu0
  %129 = vmatprep.mubr.f32.mxu0 0.0
  %130 = vmatmul.mubr.f32.gmra.mxu0 %v18
  %v131 = vpop.f32.mrf.mxu0
  %v132 = vadd.f32 %v43, %v131
  %v133 = vpop.f32.mrf.mxu0
  %134 = vmatprep.mubr.f32.mxu0 0.0
  %135 = vmatmul.mubr.f32.gmra.mxu0 %v19
  %v136 = vpop.f32.mrf.mxu0
  %v137 = vadd.f32 %v43, %v136
  %v138 = vpop.f32.mrf.mxu0
  %139 = vmatprep.mubr.f32.mxu0 0.0
  %140 = vmatmul.mubr.f32.gmra.mxu0 %v20
  %v141 = vpop.f32.mrf.mxu0
  %v142 = vadd.f32 %v43, %v141
  %v143 = vpop.f32.mrf.mxu0
  %144 = vmatprep.mubr.f32.mxu0 0.0
  %145 = vmatmul.mubr.f32.gmra.mxu0 %v21
  %v146 = vpop.f32.mrf.mxu0
  %v147 = vadd.f32 %v43, %v146
  %v148 = vpop.f32.mrf.mxu0
  %149 = vdwg.mxu0
  %v150 = vxor.u32 %v112, 2147483648
  %v151 = vxor.u32 %v117, 2147483648
  %v152 = vxor.u32 %v122, 2147483648
  %v153 = vxor.u32 %v127, 2147483648
  %v154 = vxor.u32 %v132, 2147483648
  %v155 = vxor.u32 %v137, 2147483648
  %v156 = vxor.u32 %v142, 2147483648
  %v157 = vxor.u32 %v147, 2147483648
  %v158 = vmul.f32 %v150, 1.442695
  %v159 = vpow.pop %v158
  %v160 = vmul.f32 %v151, 1.442695
  %v161 = vpow.pop %v160
  %v162 = vmul.f32 %v152, 1.442695
  %v163 = vpow.pop %v162
  %v164 = vmul.f32 %v153, 1.442695
  %v165 = vpow.pop %v164
  %v166 = vmul.f32 %v154, 1.442695
  %v167 = vpow.pop %v166
  %v168 = vmul.f32 %v155, 1.442695
  %v169 = vpow.pop %v168
  %v170 = vmul.f32 %v156, 1.442695
  %v171 = vpow.pop %v170
  %v172 = vmul.f32 %v157, 1.442695
  %v173 = vpow.pop %v172
  %v174 = vadd.f32 %v159, 1.0
  %v175 = vadd.f32 %v161, 1.0
  %v176 = vadd.f32 %v163, 1.0
  %v177 = vadd.f32 %v165, 1.0
  %v178 = vadd.f32 %v167, 1.0
  %v179 = vadd.f32 %v169, 1.0
  %v180 = vadd.f32 %v171, 1.0
  %v181 = vadd.f32 %v173, 1.0
  %v182 = vrcp.pop %v174
  %v183 = vmul.f32 1.0, %v182
  %v184 = vrcp.pop %v175
  %v185 = vmul.f32 1.0, %v184
  %v186 = vrcp.pop %v176
  %v187 = vmul.f32 1.0, %v186
  %v188 = vrcp.pop %v177
  %v189 = vmul.f32 1.0, %v188
  %v190 = vrcp.pop %v178
  %v191 = vmul.f32 1.0, %v190
  %v192 = vrcp.pop %v179
  %v193 = vmul.f32 1.0, %v192
  %v194 = vrcp.pop %v180
  %v195 = vmul.f32 1.0, %v194
  %v196 = vrcp.pop %v181
  %v197 = vmul.f32 1.0, %v196
  %198 = vst [vmem:[%s3] sm:$0xff] %v183
  %199 = vst [vmem:[%s3 + $0x8] sm:$0xff] %v185
  %200 = vst [vmem:[%s3 + $0x10] sm:$0xff] %v187
  %201 = vst [vmem:[%s3 + $0x18] sm:$0xff] %v189
  %202 = vst [vmem:[%s3 + $0x20] sm:$0xff] %v191
  %203 = vst [vmem:[%s3 + $0x28] sm:$0xff] %v193
  %204 = vst [vmem:[%s3 + $0x30] sm:$0xff] %v195
  %205 = vst [vmem:[%s3 + $0x38] sm:$0xff] %v197
  // Predicated region
  $region14: #{dkt_forward.5} parent=0 // pred_check
    _
  $region15: #{dkt_forward.5} parent=0 // pred_check_branch
    %207 = sbr.rel (0) target = $region17
  $region16: #{dkt_forward.5} parent=0 // pred_region
    _
  $region17: #{dkt_forward.5} parent=0 // pred_fallthru
    _
  // Predicated region
  $region18: #{dkt_forward.5} parent=0 // pred_check
    _
  $region19: #{dkt_forward.5} parent=0 // pred_check_branch
    %209 = sbr.rel (0) target = $region21
  $region20: #{dkt_forward.5} parent=0 // pred_region
    _
  $region21: #{dkt_forward.5} parent=0 // pred_fallthru
    _

// kernel: dkt_forward.3
$region0: #{dkt_forward.3}
  #allocation0 [shape = 'u32[]', space=smem, size = 0x4, offset = 0x4, fixed_abs, tag = 'smem constant byte address 0x4 - core index']
  #allocation1 [shape = 'u32[144,128]{1,0:T(1,128)}', space=vmem, size = 0x12000, scoped, tag = 'internal scratch']
  %s0 = inlined_call_operand.vmem [shape: f32[64,32], index: 0, kind: input, shape index: {}]
  %s1 = inlined_call_operand.vmem [shape: f32[32,512], index: 1, kind: input, shape index: {}]
  %s2 = inlined_call_operand.vmem [shape: f32[1,512], index: 2, kind: input, shape index: {}]
  %s3 = inlined_call_operand.vmem [shape: f32[64,512], index: 3, kind: output, shape index: {}]
  %s4 = sld [smem:[#allocation0]]
  $region22: #{dkt_forward.3} parent=0
    _
  %s6 = ssub.s32 1, %s4
  %s7 = scalar_select 0, %s6, %s4
  // Predicated region
  $region2: #{dkt_forward.3} parent=0 // pred_check
    _
  $region3: #{dkt_forward.3} parent=0 // pred_check_branch
    %9 = sbr.rel (0) target = $region5
  $region4: #{dkt_forward.3} parent=0 // pred_region
    _
  $region5: #{dkt_forward.3} parent=0 // pred_fallthru
    _
  // Predicated region
  $region6: #{dkt_forward.3} parent=0 // pred_check
    _
  $region7: #{dkt_forward.3} parent=0 // pred_check_branch
    %11 = sbr.rel (0) target = $region9
  $region8: #{dkt_forward.3} parent=0 // pred_region
    _
  $region9: #{dkt_forward.3} parent=0 // pred_fallthru
    _
  // Predicated region
  $region10: #{dkt_forward.3} parent=0 // pred_check
    _
  $region11: #{dkt_forward.3} parent=0 // pred_check_branch
    %13 = sbr.rel (0) target = $region13
  $region12: #{dkt_forward.3} parent=0 // pred_region
    _
  $region13: #{dkt_forward.3} parent=0 // pred_fallthru
    _
  %v14 = vld [vmem:[%s0] sm:$0xff]
  %v15 = vld [vmem:[%s0 + $0x8] sm:$0xff]
  %v16 = vld [vmem:[%s0 + $0x10] sm:$0xff]
  %v17 = vld [vmem:[%s0 + $0x18] sm:$0xff]
  %v18 = vld [vmem:[%s0 + $0x20] sm:$0xff]
  %v19 = vld [vmem:[%s0 + $0x28] sm:$0xff]
  %v20 = vld [vmem:[%s0 + $0x30] sm:$0xff]
  %v21 = vld [vmem:[%s0 + $0x38] sm:$0xff]
  %v22 = vld [vmem:[%s1] sm:$0xff]
  %v23 = vld [vmem:[%s1 + $0x8] sm:$0xff]
  %v24 = vld [vmem:[%s1 + $0x10] sm:$0xff]
  %v25 = vld [vmem:[%s1 + $0x18] sm:$0xff]
  %v26 = vld [vmem:[%s1 + $0x20] sm:$0xff]
  %v27 = vld [vmem:[%s1 + $0x28] sm:$0xff]
  %v28 = vld [vmem:[%s1 + $0x30] sm:$0xff]
  %v29 = vld [vmem:[%s1 + $0x38] sm:$0xff]
  %v30 = vld [vmem:[%s1 + $0x40] sm:$0xff]
  %v31 = vld [vmem:[%s1 + $0x48] sm:$0xff]
  %v32 = vld [vmem:[%s1 + $0x50] sm:$0xff]
  %v33 = vld [vmem:[%s1 + $0x58] sm:$0xff]
  %v34 = vld [vmem:[%s1 + $0x60] sm:$0xff]
  %v35 = vld [vmem:[%s1 + $0x68] sm:$0xff]
  %v36 = vld [vmem:[%s1 + $0x70] sm:$0xff]
  %v37 = vld [vmem:[%s1 + $0x78] sm:$0xff]
  %v38 = vld [vmem:[%s2] sm:$0xf]
  %v40 = vlaneseq
  %v41 = vshrl.u32 %v40, 7
  %v42 = vsub.s32 0, %v41
  %v43 = vrot.slane %v38, %v42
  %v44 = vlaneseq
  %v45 = vshrl.u32 %v44, 7
  %v46 = vsub.s32 1, %v45
  %v47 = vrot.slane %v38, %v46
  %v48 = vlaneseq
  %v49 = vshrl.u32 %v48, 7
  %v50 = vsub.s32 2, %v49
  %v51 = vrot.slane %v38, %v50
  %v52 = vlaneseq
  %v53 = vshrl.u32 %v52, 7
  %v54 = vsub.s32 3, %v53
  %v55 = vrot.slane %v38, %v54
  %vm60 = vcmask 261120
  %v62 = vsel %vm60, %v14, 0
  %v65 = vsel %vm60, %v15, 0
  %v68 = vsel %vm60, %v16, 0
  %v71 = vsel %vm60, %v17, 0
  %v74 = vsel %vm60, %v18, 0
  %v77 = vsel %vm60, %v19, 0
  %v80 = vsel %vm60, %v20, 0
  %v83 = vsel %vm60, %v21, 0
  %85 = vmatprep.subr.mxu0 0.0
  %86 = vmatpush1.msra.mxu0 0.0
  %87 = vmatprep.subr.mxu0 0.0
  %88 = vmatpush1.msra.mxu0 0.0
  %89 = vmatprep.subr.mxu0 0.0
  %90 = vmatpush1.msra.mxu0 0.0
  %91 = vmatprep.subr.mxu0 0.0
  %92 = vmatpush1.msra.mxu0 0.0
  %93 = vmatprep.subr.mxu0 0.0
  %94 = vmatpush1.msra.mxu0 0.0
  %95 = vmatprep.subr.mxu0 0.0
  %96 = vmatpush1.msra.mxu0 0.0
  %97 = vmatprep.subr.mxu0 0.0
  %98 = vmatpush1.msra.mxu0 0.0
  %99 = vmatprep.subr.mxu0 0.0
  %100 = vmatpush1.msra.mxu0 0.0
  %101 = vmatprep.subr.mxu0 0.0
  %102 = vmatpush1.msra.mxu0 0.0
  %103 = vmatprep.subr.mxu0 0.0
  %104 = vmatpush1.msra.mxu0 0.0
  %105 = vmatprep.subr.mxu0 0.0
  %106 = vmatpush1.msra.mxu0 0.0
  %107 = vmatprep.subr.mxu0 0.0
  %108 = vmatpush1.msra.mxu0 0.0
  %109 = vmatprep.subr.mxu0 %v35
  %110 = vmatpush1.msra.mxu0 %v34
  %111 = vmatprep.subr.mxu0 %v31
  %112 = vmatpush1.msra.mxu0 %v30
  %113 = vmatprep.subr.mxu0 %v27
  %114 = vmatpush1.msra.mxu0 %v26
  %115 = vmatprep.subr.mxu0 %v23
  %116 = vmatpush1.msra.mxu0 %v22
  %117 = vmatprep.subr.mxu0 0.0
  %118 = vmatpush2.msra.mxu0 0.0
  %119 = vmatprep.subr.mxu0 0.0
  %120 = vmatpush2.msra.mxu0 0.0
  %121 = vmatprep.subr.mxu0 0.0
  %122 = vmatpush2.msra.mxu0 0.0
  %123 = vmatprep.subr.mxu0 0.0
  %124 = vmatpush2.msra.mxu0 0.0
  %125 = vmatprep.subr.mxu0 0.0
  %126 = vmatpush2.msra.mxu0 0.0
  %127 = vmatprep.subr.mxu0 0.0
  %128 = vmatpush2.msra.mxu0 0.0
  %129 = vmatprep.subr.mxu0 0.0
  %130 = vmatpush2.msra.mxu0 0.0
  %131 = vmatprep.subr.mxu0 0.0
  %132 = vmatpush2.msra.mxu0 0.0
  %133 = vmatprep.subr.mxu0 0.0
  %134 = vmatpush2.msra.mxu0 0.0
  %135 = vmatprep.subr.mxu0 0.0
  %136 = vmatpush2.msra.mxu0 0.0
  %137 = vmatprep.subr.mxu0 0.0
  %138 = vmatpush2.msra.mxu0 0.0
  %139 = vmatprep.subr.mxu0 0.0
  %140 = vmatpush2.msra.mxu0 0.0
  %141 = vmatprep.subr.mxu0 0.0
  %142 = vmatpush2.msra.mxu0 0.0
  %143 = vmatprep.subr.mxu0 0.0
  %144 = vmatpush2.msra.mxu0 0.0
  %145 = vmatprep.subr.mxu0 0.0
  %146 = vmatpush2.msra.mxu0 0.0
  %147 = vmatprep.subr.mxu0 0.0
  %148 = vmatpush2.msra.mxu0 0.0
  %149 = vmatprep.mubr.f32.mxu0 0.0
  %150 = vmatmul.mubr.f32.gmra.mxu0 %v62
  %v151 = vpop.f32.mrf.mxu0
  %v152 = vadd.f32 %v43, %v151
  %v153 = vpop.f32.mrf.mxu0
  %v154 = vadd.f32 %v47, %v153
  %155 = vmatprep.mubr.f32.mxu0 0.0
  %156 = vmatmul.mubr.f32.gmra.mxu0 %v65
  %v157 = vpop.f32.mrf.mxu0
  %v158 = vadd.f32 %v43, %v157
  %v159 = vpop.f32.mrf.mxu0
  %v160 = vadd.f32 %v47, %v159
  %161 = vmatprep.mubr.f32.mxu0 0.0
  %162 = vmatmul.mubr.f32.gmra.mxu0 %v68
  %v163 = vpop.f32.mrf.mxu0
  %v164 = vadd.f32 %v43, %v163
  %v165 = vpop.f32.mrf.mxu0
  %v166 = vadd.f32 %v47, %v165
  %167 = vmatprep.mubr.f32.mxu0 0.0
  %168 = vmatmul.mubr.f32.gmra.mxu0 %v71
  %v169 = vpop.f32.mrf.mxu0
  %v170 = vadd.f32 %v43, %v169
  %v171 = vpop.f32.mrf.mxu0
  %v172 = vadd.f32 %v47, %v171
  %173 = vmatprep.mubr.f32.mxu0 0.0
  %174 = vmatmul.mubr.f32.gmra.mxu0 %v74
  %v175 = vpop.f32.mrf.mxu0
  %v176 = vadd.f32 %v43, %v175
  %v177 = vpop.f32.mrf.mxu0
  %v178 = vadd.f32 %v47, %v177
  %179 = vmatprep.mubr.f32.mxu0 0.0
  %180 = vmatmul.mubr.f32.gmra.mxu0 %v77
  %v181 = vpop.f32.mrf.mxu0
  %v182 = vadd.f32 %v43, %v181
  %v183 = vpop.f32.mrf.mxu0
  %v184 = vadd.f32 %v47, %v183
  %185 = vmatprep.mubr.f32.mxu0 0.0
  %186 = vmatmul.mubr.f32.gmra.mxu0 %v80
  %v187 = vpop.f32.mrf.mxu0
  %v188 = vadd.f32 %v43, %v187
  %v189 = vpop.f32.mrf.mxu0
  %v190 = vadd.f32 %v47, %v189
  %191 = vmatprep.mubr.f32.mxu0 0.0
  %192 = vmatmul.mubr.f32.gmra.mxu0 %v83
  %v193 = vpop.f32.mrf.mxu0
  %v194 = vadd.f32 %v43, %v193
  %v195 = vpop.f32.mrf.mxu0
  %v196 = vadd.f32 %v47, %v195
  %197 = vdwg.mxu0
  %198 = vmatprep.subr.mxu0 0.0
  %199 = vmatpush1.msra.mxu0 0.0
  %200 = vmatprep.subr.mxu0 0.0
  %201 = vmatpush1.msra.mxu0 0.0
  %202 = vmatprep.subr.mxu0 0.0
  %203 = vmatpush1.msra.mxu0 0.0
  %204 = vmatprep.subr.mxu0 0.0
  %205 = vmatpush1.msra.mxu0 0.0
  %206 = vmatprep.subr.mxu0 0.0
  %207 = vmatpush1.msra.mxu0 0.0
  %208 = vmatprep.subr.mxu0 0.0
  %209 = vmatpush1.msra.mxu0 0.0
  %210 = vmatprep.subr.mxu0 0.0
  %211 = vmatpush1.msra.mxu0 0.0
  %212 = vmatprep.subr.mxu0 0.0
  %213 = vmatpush1.msra.mxu0 0.0
  %214 = vmatprep.subr.mxu0 0.0
  %215 = vmatpush1.msra.mxu0 0.0
  %216 = vmatprep.subr.mxu0 0.0
  %217 = vmatpush1.msra.mxu0 0.0
  %218 = vmatprep.subr.mxu0 0.0
  %219 = vmatpush1.msra.mxu0 0.0
  %220 = vmatprep.subr.mxu0 0.0
  %221 = vmatpush1.msra.mxu0 0.0
  %222 = vmatprep.subr.mxu0 %v37
  %223 = vmatpush1.msra.mxu0 %v36
  %224 = vmatprep.subr.mxu0 %v33
  %225 = vmatpush1.msra.mxu0 %v32
  %226 = vmatprep.subr.mxu0 %v29
  %227 = vmatpush1.msra.mxu0 %v28
  %228 = vmatprep.subr.mxu0 %v25
  %229 = vmatpush1.msra.mxu0 %v24
  %230 = vmatprep.subr.mxu0 0.0
  %231 = vmatpush2.msra.mxu0 0.0
  %232 = vmatprep.subr.mxu0 0.0
  %233 = vmatpush2.msra.mxu0 0.0
  %234 = vmatprep.subr.mxu0 0.0
  %235 = vmatpush2.msra.mxu0 0.0
  %236 = vmatprep.subr.mxu0 0.0
  %237 = vmatpush2.msra.mxu0 0.0
  %238 = vmatprep.subr.mxu0 0.0
  %239 = vmatpush2.msra.mxu0 0.0
  %240 = vmatprep.subr.mxu0 0.0
  %241 = vmatpush2.msra.mxu0 0.0
  %242 = vmatprep.subr.mxu0 0.0
  %243 = vmatpush2.msra.mxu0 0.0
  %244 = vmatprep.subr.mxu0 0.0
  %245 = vmatpush2.msra.mxu0 0.0
  %246 = vmatprep.subr.mxu0 0.0
  %247 = vmatpush2.msra.mxu0 0.0
  %248 = vmatprep.subr.mxu0 0.0
  %249 = vmatpush2.msra.mxu0 0.0
  %250 = vmatprep.subr.mxu0 0.0
  %251 = vmatpush2.msra.mxu0 0.0
  %252 = vmatprep.subr.mxu0 0.0
  %253 = vmatpush2.msra.mxu0 0.0
  %254 = vmatprep.subr.mxu0 0.0
  %255 = vmatpush2.msra.mxu0 0.0
  %256 = vmatprep.subr.mxu0 0.0
  %257 = vmatpush2.msra.mxu0 0.0
  %258 = vmatprep.subr.mxu0 0.0
  %259 = vmatpush2.msra.mxu0 0.0
  %260 = vmatprep.subr.mxu0 0.0
  %261 = vmatpush2.msra.mxu0 0.0
  %262 = vmatprep.mubr.f32.mxu0 0.0
  %263 = vmatmul.mubr.f32.gmra.mxu0 %v62
  %v264 = vpop.f32.mrf.mxu0
  %v265 = vadd.f32 %v51, %v264
  %v266 = vpop.f32.mrf.mxu0
  %v267 = vadd.f32 %v55, %v266
  %268 = vmatprep.mubr.f32.mxu0 0.0
  %269 = vmatmul.mubr.f32.gmra.mxu0 %v65
  %v270 = vpop.f32.mrf.mxu0
  %v271 = vadd.f32 %v51, %v270
  %v272 = vpop.f32.mrf.mxu0
  %v273 = vadd.f32 %v55, %v272
  %274 = vmatprep.mubr.f32.mxu0 0.0
  %275 = vmatmul.mubr.f32.gmra.mxu0 %v68
  %v276 = vpop.f32.mrf.mxu0
  %v277 = vadd.f32 %v51, %v276
  %v278 = vpop.f32.mrf.mxu0
  %v279 = vadd.f32 %v55, %v278
  %280 = vmatprep.mubr.f32.mxu0 0.0
  %281 = vmatmul.mubr.f32.gmra.mxu0 %v71
  %v282 = vpop.f32.mrf.mxu0
  %v283 = vadd.f32 %v51, %v282
  %v284 = vpop.f32.mrf.mxu0
  %v285 = vadd.f32 %v55, %v284
  %286 = vmatprep.mubr.f32.mxu0 0.0
  %287 = vmatmul.mubr.f32.gmra.mxu0 %v74
  %v288 = vpop.f32.mrf.mxu0
  %v289 = vadd.f32 %v51, %v288
  %v290 = vpop.f32.mrf.mxu0
  %v291 = vadd.f32 %v55, %v290
  %292 = vmatprep.mubr.f32.mxu0 0.0
  %293 = vmatmul.mubr.f32.gmra.mxu0 %v77
  %v294 = vpop.f32.mrf.mxu0
  %v295 = vadd.f32 %v51, %v294
  %v296 = vpop.f32.mrf.mxu0
  %v297 = vadd.f32 %v55, %v296
  %298 = vmatprep.mubr.f32.mxu0 0.0
  %299 = vmatmul.mubr.f32.gmra.mxu0 %v80
  %v300 = vpop.f32.mrf.mxu0
  %v301 = vadd.f32 %v51, %v300
  %v302 = vpop.f32.mrf.mxu0
  %v303 = vadd.f32 %v55, %v302
  %304 = vmatprep.mubr.f32.mxu0 0.0
  %305 = vmatmul.mubr.f32.gmra.mxu0 %v83
  %v306 = vpop.f32.mrf.mxu0
  %v307 = vadd.f32 %v51, %v306
  %v308 = vpop.f32.mrf.mxu0
  %v309 = vadd.f32 %v55, %v308
  %310 = vdwg.mxu0
  %311 = vst [vmem:[%s3] sm:$0xff] %v152
  %312 = vst [vmem:[%s3 + $0x8] sm:$0xff] %v154
  %313 = vst [vmem:[%s3 + $0x10] sm:$0xff] %v265
  %314 = vst [vmem:[%s3 + $0x18] sm:$0xff] %v267
  %315 = vst [vmem:[%s3 + $0x20] sm:$0xff] %v158
  %316 = vst [vmem:[%s3 + $0x28] sm:$0xff] %v160
  %317 = vst [vmem:[%s3 + $0x30] sm:$0xff] %v271
  %318 = vst [vmem:[%s3 + $0x38] sm:$0xff] %v273
  %319 = vst [vmem:[%s3 + $0x40] sm:$0xff] %v164
  %320 = vst [vmem:[%s3 + $0x48] sm:$0xff] %v166
  %321 = vst [vmem:[%s3 + $0x50] sm:$0xff] %v277
  %322 = vst [vmem:[%s3 + $0x58] sm:$0xff] %v279
  %323 = vst [vmem:[%s3 + $0x60] sm:$0xff] %v170
  %324 = vst [vmem:[%s3 + $0x68] sm:$0xff] %v172
  %325 = vst [vmem:[%s3 + $0x70] sm:$0xff] %v283
  %326 = vst [vmem:[%s3 + $0x78] sm:$0xff] %v285
  %327 = vst [vmem:[%s3 + $0x80] sm:$0xff] %v176
  %328 = vst [vmem:[%s3 + $0x88] sm:$0xff] %v178
  %329 = vst [vmem:[%s3 + $0x90] sm:$0xff] %v289
  %330 = vst [vmem:[%s3 + $0x98] sm:$0xff] %v291
  %331 = vst [vmem:[%s3 + $0xa0] sm:$0xff] %v182
  %332 = vst [vmem:[%s3 + $0xa8] sm:$0xff] %v184
  %333 = vst [vmem:[%s3 + $0xb0] sm:$0xff] %v295
  %334 = vst [vmem:[%s3 + $0xb8] sm:$0xff] %v297
  %335 = vst [vmem:[%s3 + $0xc0] sm:$0xff] %v188
  %336 = vst [vmem:[%s3 + $0xc8] sm:$0xff] %v190
  %337 = vst [vmem:[%s3 + $0xd0] sm:$0xff] %v301
  %338 = vst [vmem:[%s3 + $0xd8] sm:$0xff] %v303
  %339 = vst [vmem:[%s3 + $0xe0] sm:$0xff] %v194
  %340 = vst [vmem:[%s3 + $0xe8] sm:$0xff] %v196
  %341 = vst [vmem:[%s3 + $0xf0] sm:$0xff] %v307
  %342 = vst [vmem:[%s3 + $0xf8] sm:$0xff] %v309
  // Predicated region
  $region14: #{dkt_forward.3} parent=0 // pred_check
    _
  $region15: #{dkt_forward.3} parent=0 // pred_check_branch
    %344 = sbr.rel (0) target = $region17
  $region16: #{dkt_forward.3} parent=0 // pred_region
    _
  $region17: #{dkt_forward.3} parent=0 // pred_fallthru
    _
  // Predicated region
  $region18: #{dkt_forward.3} parent=0 // pred_check
    _
  $region19: #{dkt_forward.3} parent=0 // pred_check_branch
    %346 = sbr.rel (0) target = $region21
  $region20: #{dkt_forward.3} parent=0 // pred_region
    _
  $region21: #{dkt_forward.3} parent=0 // pred_fallthru
    _

// kernel: dkt_forward.4
$region0: #{dkt_forward.4}
  #allocation0 [shape = 'u32[]', space=smem, size = 0x4, offset = 0x4, fixed_abs, tag = 'smem constant byte address 0x4 - core index']
  #allocation1 [shape = 'u32[144,128]{1,0:T(1,128)}', space=vmem, size = 0x12000, scoped, tag = 'internal scratch']
  #allocation2 [shape = 'f32[8,128]{1,0:T(8,128)}', space=vmem, size = 0x1000, scoped, tag = 'scratch operand']
  #allocation3 [shape = 'f32[8,128]{1,0:T(8,128)}', space=vmem, size = 0x1000, scoped, tag = 'scratch operand']
  %s0 = inlined_call_operand.vmem [shape: f32[8,8,512], index: 0, kind: input, shape index: {}]
  %s1 = inlined_call_operand.vmem [shape: f32[128,512], index: 1, kind: input, shape index: {}]
  %s2 = inlined_call_operand.vmem [shape: f32[8,8,128], index: 2, kind: output, shape index: {}]
  %s3 = sld [smem:[#allocation0]]
  $region22: #{dkt_forward.4} parent=0
    _
  %s5 = ssub.s32 1, %s3
  %s6 = scalar_select 0, %s5, %s3
  // Predicated region
  $region2: #{dkt_forward.4} parent=0 // pred_check
    _
  $region3: #{dkt_forward.4} parent=0 // pred_check_branch
    %8 = sbr.rel (0) target = $region5
  $region4: #{dkt_forward.4} parent=0 // pred_region
    _
  $region5: #{dkt_forward.4} parent=0 // pred_fallthru
    _
  // Predicated region
  $region6: #{dkt_forward.4} parent=0 // pred_check
    _
  $region7: #{dkt_forward.4} parent=0 // pred_check_branch
    %10 = sbr.rel (0) target = $region9
  $region8: #{dkt_forward.4} parent=0 // pred_region
    _
  $region9: #{dkt_forward.4} parent=0 // pred_fallthru
    _
  %p11 = scmp.eq.s32.totalorder 0, 0
  // Predicated region
  $region10: #{dkt_forward.4} parent=0 // pred_check
    %p12 = pneg %p11
  $region11: #{dkt_forward.4} parent=0 // pred_check_branch
    %14 = sbr.rel (%p12) target = $region13
  $region12: #{dkt_forward.4} parent=0 // pred_region
    %15 = vst [vmem:[#allocation2] sm:$0xff] 0.0
    %16 = vst [vmem:[#allocation3] sm:$0xff] 0.0
  $region13: #{dkt_forward.4} parent=0 // pred_fallthru
    _
  %v17 = vld [vmem:[%s1] sm:$0xff]
  %v18 = vld [vmem:[%s1 + $0x8] sm:$0xff]
  %v19 = vld [vmem:[%s1 + $0x10] sm:$0xff]
  %v20 = vld [vmem:[%s1 + $0x18] sm:$0xff]
  %v21 = vld [vmem:[%s1 + $0x20] sm:$0xff]
  %v22 = vld [vmem:[%s1 + $0x28] sm:$0xff]
  %v23 = vld [vmem:[%s1 + $0x30] sm:$0xff]
  %v24 = vld [vmem:[%s1 + $0x38] sm:$0xff]
  %v25 = vld [vmem:[%s1 + $0x40] sm:$0xff]
  %v26 = vld [vmem:[%s1 + $0x48] sm:$0xff]
  %v27 = vld [vmem:[%s1 + $0x50] sm:$0xff]
  %v28 = vld [vmem:[%s1 + $0x58] sm:$0xff]
  %v29 = vld [vmem:[%s1 + $0x60] sm:$0xff]
  %v30 = vld [vmem:[%s1 + $0x68] sm:$0xff]
  %v31 = vld [vmem:[%s1 + $0x70] sm:$0xff]
  %v32 = vld [vmem:[%s1 + $0x78] sm:$0xff]
  %v33 = vld [vmem:[%s1 + $0x80] sm:$0xff]
  %v34 = vld [vmem:[%s1 + $0x88] sm:$0xff]
  %v35 = vld [vmem:[%s1 + $0x90] sm:$0xff]
  %v36 = vld [vmem:[%s1 + $0x98] sm:$0xff]
  %v37 = vld [vmem:[%s1 + $0xa0] sm:$0xff]
  %v38 = vld [vmem:[%s1 + $0xa8] sm:$0xff]
  %v39 = vld [vmem:[%s1 + $0xb0] sm:$0xff]
  %v40 = vld [vmem:[%s1 + $0xb8] sm:$0xff]
  %v41 = vld [vmem:[%s1 + $0xc0] sm:$0xff]
  %v42 = vld [vmem:[%s1 + $0xc8] sm:$0xff]
  %v43 = vld [vmem:[%s1 + $0xd0] sm:$0xff]
  %v44 = vld [vmem:[%s1 + $0xd8] sm:$0xff]
  %v45 = vld [vmem:[%s1 + $0xe0] sm:$0xff]
  %v46 = vld [vmem:[%s1 + $0xe8] sm:$0xff]
  %v47 = vld [vmem:[%s1 + $0xf0] sm:$0xff]
  %v48 = vld [vmem:[%s1 + $0xf8] sm:$0xff]
  %v49 = vld [vmem:[%s1 + $0x100] sm:$0xff]
  %v50 = vld [vmem:[%s1 + $0x108] sm:$0xff]
  %v51 = vld [vmem:[%s1 + $0x110] sm:$0xff]
  %v52 = vld [vmem:[%s1 + $0x118] sm:$0xff]
  %v53 = vld [vmem:[%s1 + $0x120] sm:$0xff]
  %v54 = vld [vmem:[%s1 + $0x128] sm:$0xff]
  %v55 = vld [vmem:[%s1 + $0x130] sm:$0xff]
  %v56 = vld [vmem:[%s1 + $0x138] sm:$0xff]
  %v57 = vld [vmem:[%s1 + $0x140] sm:$0xff]
  %v58 = vld [vmem:[%s1 + $0x148] sm:$0xff]
  %v59 = vld [vmem:[%s1 + $0x150] sm:$0xff]
  %v60 = vld [vmem:[%s1 + $0x158] sm:$0xff]
  %v61 = vld [vmem:[%s1 + $0x160] sm:$0xff]
  %v62 = vld [vmem:[%s1 + $0x168] sm:$0xff]
  %v63 = vld [vmem:[%s1 + $0x170] sm:$0xff]
  %v64 = vld [vmem:[%s1 + $0x178] sm:$0xff]
  %v65 = vld [vmem:[%s1 + $0x180] sm:$0xff]
  %v66 = vld [vmem:[%s1 + $0x188] sm:$0xff]
  %v67 = vld [vmem:[%s1 + $0x190] sm:$0xff]
  %v68 = vld [vmem:[%s1 + $0x198] sm:$0xff]
  %v69 = vld [vmem:[%s1 + $0x1a0] sm:$0xff]
  %v70 = vld [vmem:[%s1 + $0x1a8] sm:$0xff]
  %v71 = vld [vmem:[%s1 + $0x1b0] sm:$0xff]
  %v72 = vld [vmem:[%s1 + $0x1b8] sm:$0xff]
  %v73 = vld [vmem:[%s1 + $0x1c0] sm:$0xff]
  %v74 = vld [vmem:[%s1 + $0x1c8] sm:$0xff]
  %v75 = vld [vmem:[%s1 + $0x1d0] sm:$0xff]
  %v76 = vld [vmem:[%s1 + $0x1d8] sm:$0xff]
  %v77 = vld [vmem:[%s1 + $0x1e0] sm:$0xff]
  %v78 = vld [vmem:[%s1 + $0x1e8] sm:$0xff]
  %v79 = vld [vmem:[%s1 + $0x1f0] sm:$0xff]
  %v80 = vld [vmem:[%s1 + $0x1f8] sm:$0xff]
  %v81 = vld [vmem:[#allocation2] sm:$0xff]
  %v82 = vld [vmem:[#allocation3] sm:$0xff]
  %v83 = vld [vmem:[%s0] sm:$0xff]
  %v84 = vld [vmem:[%s0 + $0x8] sm:$0xff]
  %v85 = vld [vmem:[%s0 + $0x10] sm:$0xff]
  %v86 = vld [vmem:[%s0 + $0x18] sm:$0xff]
  %87 = vmatprep.subr.mxu0 %v78
  %88 = vmatpush1.msra.mxu0 %v77
  %89 = vmatprep.subr.mxu0 %v74
  %90 = vmatpush1.msra.mxu0 %v73
  %91 = vmatprep.subr.mxu0 %v70
  %92 = vmatpush1.msra.mxu0 %v69
  %93 = vmatprep.subr.mxu0 %v66
  %94 = vmatpush1.msra.mxu0 %v65
  %95 = vmatprep.subr.mxu0 %v62
  %96 = vmatpush1.msra.mxu0 %v61
  %97 = vmatprep.subr.mxu0 %v58
  %98 = vmatpush1.msra.mxu0 %v57
  %99 = vmatprep.subr.mxu0 %v54
  %100 = vmatpush1.msra.mxu0 %v53
  %101 = vmatprep.subr.mxu0 %v50
  %102 = vmatpush1.msra.mxu0 %v49
  %103 = vmatprep.subr.mxu0 %v46
  %104 = vmatpush1.msra.mxu0 %v45
  %105 = vmatprep.subr.mxu0 %v42
  %106 = vmatpush1.msra.mxu0 %v41
  %107 = vmatprep.subr.mxu0 %v38
  %108 = vmatpush1.msra.mxu0 %v37
  %109 = vmatprep.subr.mxu0 %v34
  %110 = vmatpush1.msra.mxu0 %v33
  %111 = vmatprep.subr.mxu0 %v30
  %112 = vmatpush1.msra.mxu0 %v29
  %113 = vmatprep.subr.mxu0 %v26
  %114 = vmatpush1.msra.mxu0 %v25
  %115 = vmatprep.subr.mxu0 %v22
  %116 = vmatpush1.msra.mxu0 %v21
  %117 = vmatprep.subr.mxu0 %v18
  %118 = vmatpush1.msra.mxu0 %v17
  %119 = vmatprep.subr.mxu0 0.0
  %120 = vmatpush2.msra.mxu0 0.0
  %121 = vmatprep.subr.mxu0 0.0
  %122 = vmatpush2.msra.mxu0 0.0
  %123 = vmatprep.subr.mxu0 0.0
  %124 = vmatpush2.msra.mxu0 0.0
  %125 = vmatprep.subr.mxu0 0.0
  %126 = vmatpush2.msra.mxu0 0.0
  %127 = vmatprep.subr.mxu0 0.0
  %128 = vmatpush2.msra.mxu0 0.0
  %129 = vmatprep.subr.mxu0 0.0
  %130 = vmatpush2.msra.mxu0 0.0
  %131 = vmatprep.subr.mxu0 0.0
  %132 = vmatpush2.msra.mxu0 0.0
  %133 = vmatprep.subr.mxu0 0.0
  %134 = vmatpush2.msra.mxu0 0.0
  %135 = vmatprep.subr.mxu0 0.0
  %136 = vmatpush2.msra.mxu0 0.0
  %137 = vmatprep.subr.mxu0 0.0
  %138 = vmatpush2.msra.mxu0 0.0
  %139 = vmatprep.subr.mxu0 0.0
  %140 = vmatpush2.msra.mxu0 0.0
  %141 = vmatprep.subr.mxu0 0.0
  %142 = vmatpush2.msra.mxu0 0.0
  %143 = vmatprep.subr.mxu0 0.0
  %144 = vmatpush2.msra.mxu0 0.0
  %145 = vmatprep.subr.mxu0 0.0
  %146 = vmatpush2.msra.mxu0 0.0
  %147 = vmatprep.subr.mxu0 0.0
  %148 = vmatpush2.msra.mxu0 0.0
  %149 = vmatprep.subr.mxu0 0.0
  %150 = vmatpush2.msra.mxu0 0.0
  %151 = vmatprep.mubr.f32.mxu0 0.0
  %152 = vmatmul.mubr.f32.gmra.mxu0 %v81
  %v153 = vpop.f32.mrf.mxu0
  %v154 = vadd.f32 0.0, %v153
  %v155 = vpop.f32.mrf.mxu0
  %v156 = vadd.f32 0.0, %v155
  %157 = vdwg.mxu0
  %158 = vmatprep.subr.mxu0 %v80
  %159 = vmatpush1.msra.mxu0 %v79
  %160 = vmatprep.subr.mxu0 %v76
  %161 = vmatpush1.msra.mxu0 %v75
  %162 = vmatprep.subr.mxu0 %v72
  %163 = vmatpush1.msra.mxu0 %v71
  %164 = vmatprep.subr.mxu0 %v68
  %165 = vmatpush1.msra.mxu0 %v67
  %166 = vmatprep.subr.mxu0 %v64
  %167 = vmatpush1.msra.mxu0 %v63
  %168 = vmatprep.subr.mxu0 %v60
  %169 = vmatpush1.msra.mxu0 %v59
  %170 = vmatprep.subr.mxu0 %v56
  %171 = vmatpush1.msra.mxu0 %v55
  %172 = vmatprep.subr.mxu0 %v52
  %173 = vmatpush1.msra.mxu0 %v51
  %174 = vmatprep.subr.mxu0 %v48
  %175 = vmatpush1.msra.mxu0 %v47
  %176 = vmatprep.subr.mxu0 %v44
  %177 = vmatpush1.msra.mxu0 %v43
  %178 = vmatprep.subr.mxu0 %v40
  %179 = vmatpush1.msra.mxu0 %v39
  %180 = vmatprep.subr.mxu0 %v36
  %181 = vmatpush1.msra.mxu0 %v35
  %182 = vmatprep.subr.mxu0 %v32
  %183 = vmatpush1.msra.mxu0 %v31
  %184 = vmatprep.subr.mxu0 %v28
  %185 = vmatpush1.msra.mxu0 %v27
  %186 = vmatprep.subr.mxu0 %v24
  %187 = vmatpush1.msra.mxu0 %v23
  %188 = vmatprep.subr.mxu0 %v20
  %189 = vmatpush1.msra.mxu0 %v19
  %190 = vmatprep.subr.mxu0 0.0
  %191 = vmatpush2.msra.mxu0 0.0
  %192 = vmatprep.subr.mxu0 0.0
  %193 = vmatpush2.msra.mxu0 0.0
  %194 = vmatprep.subr.mxu0 0.0
  %195 = vmatpush2.msra.mxu0 0.0
  %196 = vmatprep.subr.mxu0 0.0
  %197 = vmatpush2.msra.mxu0 0.0
  %198 = vmatprep.subr.mxu0 0.0
  %199 = vmatpush2.msra.mxu0 0.0
  %200 = vmatprep.subr.mxu0 0.0
  %201 = vmatpush2.msra.mxu0 0.0
  %202 = vmatprep.subr.mxu0 0.0
  %203 = vmatpush2.msra.mxu0 0.0
  %204 = vmatprep.subr.mxu0 0.0
  %205 = vmatpush2.msra.mxu0 0.0
  %206 = vmatprep.subr.mxu0 0.0
  %207 = vmatpush2.msra.mxu0 0.0
  %208 = vmatprep.subr.mxu0 0.0
  %209 = vmatpush2.msra.mxu0 0.0
  %210 = vmatprep.subr.mxu0 0.0
  %211 = vmatpush2.msra.mxu0 0.0
  %212 = vmatprep.subr.mxu0 0.0
  %213 = vmatpush2.msra.mxu0 0.0
  %214 = vmatprep.subr.mxu0 0.0
  %215 = vmatpush2.msra.mxu0 0.0
  %216 = vmatprep.subr.mxu0 0.0
  %217 = vmatpush2.msra.mxu0 0.0
  %218 = vmatprep.subr.mxu0 0.0
  %219 = vmatpush2.msra.mxu0 0.0
  %220 = vmatprep.subr.mxu0 0.0
  %221 = vmatpush2.msra.mxu0 0.0
  %222 = vmatprep.mubr.f32.mxu0 0.0
  %223 = vmatmul.mubr.f32.gmra.mxu0 %v81
  %v224 = vpop.f32.mrf.mxu0
  %v225 = vadd.f32 0.0, %v224
  %v226 = vpop.f32.mrf.mxu0
  %v227 = vadd.f32 0.0, %v226
  %228 = vdwg.mxu0
  %v229 = vadd.f32 %v83, %v154
  %v230 = vadd.f32 %v84, %v156
  %v231 = vadd.f32 %v85, %v225
  %v232 = vadd.f32 %v86, %v227
  %v233 = vxor.u32 %v229, 2147483648
  %v234 = vmul.f32 %v233, 1.442695
  %v235 = vpow.pop %v234
  %v236 = vadd.f32 %v235, 1.0
  %v237 = vrcp.pop %v236
  %v238 = vmul.f32 1.0, %v237
  %v239 = vxor.u32 %v230, 2147483648
  %v240 = vmul.f32 %v239, 1.442695
  %v241 = vpow.pop %v240
  %v242 = vadd.f32 %v241, 1.0
  %v243 = vrcp.pop %v242
  %v244 = vmul.f32 1.0, %v243
  %v245 = vtanh.pop %v231
  %v246 = vxor.u32 %v232, 2147483648
  %v247 = vmul.f32 %v246, 1.442695
  %v248 = vpow.pop %v247
  %v249 = vadd.f32 %v248, 1.0
  %v250 = vrcp.pop %v249
  %v251 = vmul.f32 1.0, %v250
  %v252 = vmul.f32 %v244, %v82
  %v253 = vmul.f32 %v238, %v245
  %v254 = vadd.f32 %v252, %v253
  %v255 = vtanh.pop %v254
  %v256 = vmul.f32 %v251, %v255
  %257 = vst [vmem:[%s2] sm:$0xff] %v256
  %s258 = scalar_lea.vmem %s0, 32
  %v259 = vld [vmem:[%s258] sm:$0xff]
  %v260 = vld [vmem:[%s258 + $0x8] sm:$0xff]
  %v261 = vld [vmem:[%s258 + $0x10] sm:$0xff]
  %v262 = vld [vmem:[%s258 + $0x18] sm:$0xff]
  %263 = vmatprep.subr.mxu0 %v78
  %264 = vmatpush1.msra.mxu0 %v77
  %265 = vmatprep.subr.mxu0 %v74
  %266 = vmatpush1.msra.mxu0 %v73
  %267 = vmatprep.subr.mxu0 %v70
  %268 = vmatpush1.msra.mxu0 %v69
  %269 = vmatprep.subr.mxu0 %v66
  %270 = vmatpush1.msra.mxu0 %v65
  %271 = vmatprep.subr.mxu0 %v62
  %272 = vmatpush1.msra.mxu0 %v61
  %273 = vmatprep.subr.mxu0 %v58
  %274 = vmatpush1.msra.mxu0 %v57
  %275 = vmatprep.subr.mxu0 %v54
  %276 = vmatpush1.msra.mxu0 %v53
  %277 = vmatprep.subr.mxu0 %v50
  %278 = vmatpush1.msra.mxu0 %v49
  %279 = vmatprep.subr.mxu0 %v46
  %280 = vmatpush1.msra.mxu0 %v45
  %281 = vmatprep.subr.mxu0 %v42
  %282 = vmatpush1.msra.mxu0 %v41
  %283 = vmatprep.subr.mxu0 %v38
  %284 = vmatpush1.msra.mxu0 %v37
  %285 = vmatprep.subr.mxu0 %v34
  %286 = vmatpush1.msra.mxu0 %v33
  %287 = vmatprep.subr.mxu0 %v30
  %288 = vmatpush1.msra.mxu0 %v29
  %289 = vmatprep.subr.mxu0 %v26
  %290 = vmatpush1.msra.mxu0 %v25
  %291 = vmatprep.subr.mxu0 %v22
  %292 = vmatpush1.msra.mxu0 %v21
  %293 = vmatprep.subr.mxu0 %v18
  %294 = vmatpush1.msra.mxu0 %v17
  %295 = vmatprep.subr.mxu0 0.0
  %296 = vmatpush2.msra.mxu0 0.0
  %297 = vmatprep.subr.mxu0 0.0
  %298 = vmatpush2.msra.mxu0 0.0
  %299 = vmatprep.subr.mxu0 0.0
  %300 = vmatpush2.msra.mxu0 0.0
  %301 = vmatprep.subr.mxu0 0.0
  %302 = vmatpush2.msra.mxu0 0.0
  %303 = vmatprep.subr.mxu0 0.0
  %304 = vmatpush2.msra.mxu0 0.0
  %305 = vmatprep.subr.mxu0 0.0
  %306 = vmatpush2.msra.mxu0 0.0
  %307 = vmatprep.subr.mxu0 0.0
  %308 = vmatpush2.msra.mxu0 0.0
  %309 = vmatprep.subr.mxu0 0.0
  %310 = vmatpush2.msra.mxu0 0.0
  %311 = vmatprep.subr.mxu0 0.0
  %312 = vmatpush2.msra.mxu0 0.0
  %313 = vmatprep.subr.mxu0 0.0
  %314 = vmatpush2.msra.mxu0 0.0
  %315 = vmatprep.subr.mxu0 0.0
  %316 = vmatpush2.msra.mxu0 0.0
  %317 = vmatprep.subr.mxu0 0.0
  %318 = vmatpush2.msra.mxu0 0.0
  %319 = vmatprep.subr.mxu0 0.0
  %320 = vmatpush2.msra.mxu0 0.0
  %321 = vmatprep.subr.mxu0 0.0
  %322 = vmatpush2.msra.mxu0 0.0
  %323 = vmatprep.subr.mxu0 0.0
  %324 = vmatpush2.msra.mxu0 0.0
  %325 = vmatprep.subr.mxu0 0.0
  %326 = vmatpush2.msra.mxu0 0.0
  %327 = vmatprep.mubr.f32.mxu0 0.0
  %328 = vmatmul.mubr.f32.gmra.mxu0 %v256
  %v329 = vpop.f32.mrf.mxu0
  %v330 = vadd.f32 0.0, %v329
  %v331 = vpop.f32.mrf.mxu0
  %v332 = vadd.f32 0.0, %v331
  %333 = vdwg.mxu0
  %334 = vmatprep.subr.mxu0 %v80
  %335 = vmatpush1.msra.mxu0 %v79
  %336 = vmatprep.subr.mxu0 %v76
  %337 = vmatpush1.msra.mxu0 %v75
  %338 = vmatprep.subr.mxu0 %v72
  %339 = vmatpush1.msra.mxu0 %v71
  %340 = vmatprep.subr.mxu0 %v68
  %341 = vmatpush1.msra.mxu0 %v67
  %342 = vmatprep.subr.mxu0 %v64
  %343 = vmatpush1.msra.mxu0 %v63
  %344 = vmatprep.subr.mxu0 %v60
  %345 = vmatpush1.msra.mxu0 %v59
  %346 = vmatprep.subr.mxu0 %v56
  %347 = vmatpush1.msra.mxu0 %v55
  %348 = vmatprep.subr.mxu0 %v52
  %349 = vmatpush1.msra.mxu0 %v51
  %350 = vmatprep.subr.mxu0 %v48
  %351 = vmatpush1.msra.mxu0 %v47
  %352 = vmatprep.subr.mxu0 %v44
  %353 = vmatpush1.msra.mxu0 %v43
  %354 = vmatprep.subr.mxu0 %v40
  %355 = vmatpush1.msra.mxu0 %v39
  %356 = vmatprep.subr.mxu0 %v36
  %357 = vmatpush1.msra.mxu0 %v35
  %358 = vmatprep.subr.mxu0 %v32
  %359 = vmatpush1.msra.mxu0 %v31
  %360 = vmatprep.subr.mxu0 %v28
  %361 = vmatpush1.msra.mxu0 %v27
  %362 = vmatprep.subr.mxu0 %v24
  %363 = vmatpush1.msra.mxu0 %v23
  %364 = vmatprep.subr.mxu0 %v20
  %365 = vmatpush1.msra.mxu0 %v19
  %366 = vmatprep.subr.mxu0 0.0
  %367 = vmatpush2.msra.mxu0 0.0
  %368 = vmatprep.subr.mxu0 0.0
  %369 = vmatpush2.msra.mxu0 0.0
  %370 = vmatprep.subr.mxu0 0.0
  %371 = vmatpush2.msra.mxu0 0.0
  %372 = vmatprep.subr.mxu0 0.0
  %373 = vmatpush2.msra.mxu0 0.0
  %374 = vmatprep.subr.mxu0 0.0
  %375 = vmatpush2.msra.mxu0 0.0
  %376 = vmatprep.subr.mxu0 0.0
  %377 = vmatpush2.msra.mxu0 0.0
  %378 = vmatprep.subr.mxu0 0.0
  %379 = vmatpush2.msra.mxu0 0.0
  %380 = vmatprep.subr.mxu0 0.0
  %381 = vmatpush2.msra.mxu0 0.0
  %382 = vmatprep.subr.mxu0 0.0
  %383 = vmatpush2.msra.mxu0 0.0
  %384 = vmatprep.subr.mxu0 0.0
  %385 = vmatpush2.msra.mxu0 0.0
  %386 = vmatprep.subr.mxu0 0.0
  %387 = vmatpush2.msra.mxu0 0.0
  %388 = vmatprep.subr.mxu0 0.0
  %389 = vmatpush2.msra.mxu0 0.0
  %390 = vmatprep.subr.mxu0 0.0
  %391 = vmatpush2.msra.mxu0 0.0
  %392 = vmatprep.subr.mxu0 0.0
  %393 = vmatpush2.msra.mxu0 0.0
  %394 = vmatprep.subr.mxu0 0.0
  %395 = vmatpush2.msra.mxu0 0.0
  %396 = vmatprep.subr.mxu0 0.0
  %397 = vmatpush2.msra.mxu0 0.0
  %398 = vmatprep.mubr.f32.mxu0 0.0
  %399 = vmatmul.mubr.f32.gmra.mxu0 %v256
  %v400 = vpop.f32.mrf.mxu0
  %v401 = vadd.f32 0.0, %v400
  %v402 = vpop.f32.mrf.mxu0
  %v403 = vadd.f32 0.0, %v402
  %404 = vdwg.mxu0
  %v405 = vadd.f32 %v259, %v330
  %v406 = vadd.f32 %v260, %v332
  %v407 = vadd.f32 %v261, %v401
  %v408 = vadd.f32 %v262, %v403
  %v409 = vxor.u32 %v405, 2147483648
  %v410 = vmul.f32 %v409, 1.442695
  %v411 = vpow.pop %v410
  %v412 = vadd.f32 %v411, 1.0
  %v413 = vrcp.pop %v412
  %v414 = vmul.f32 1.0, %v413
  %v415 = vxor.u32 %v406, 2147483648
  %v416 = vmul.f32 %v415, 1.442695
  %v417 = vpow.pop %v416
  %v418 = vadd.f32 %v417, 1.0
  %v419 = vrcp.pop %v418
  %v420 = vmul.f32 1.0, %v419
  %v421 = vtanh.pop %v407
  %v422 = vxor.u32 %v408, 2147483648
  %v423 = vmul.f32 %v422, 1.442695
  %v424 = vpow.pop %v423
  %v425 = vadd.f32 %v424, 1.0
  %v426 = vrcp.pop %v425
  %v427 = vmul.f32 1.0, %v426
  %v428 = vmul.f32 %v420, %v254
  %v429 = vmul.f32 %v414, %v421
  %v430 = vadd.f32 %v428, %v429
  %v431 = vtanh.pop %v430
  %v432 = vmul.f32 %v427, %v431
  %s433 = scalar_lea.vmem %s2, 8
  %434 = vst [vmem:[%s433] sm:$0xff] %v432
  %s435 = scalar_lea.vmem %s0, 64
  %v436 = vld [vmem:[%s435] sm:$0xff]
  %v437 = vld [vmem:[%s435 + $0x8] sm:$0xff]
  %v438 = vld [vmem:[%s435 + $0x10] sm:$0xff]
  %v439 = vld [vmem:[%s435 + $0x18] sm:$0xff]
  %440 = vmatprep.subr.mxu0 %v78
  %441 = vmatpush1.msra.mxu0 %v77
  %442 = vmatprep.subr.mxu0 %v74
  %443 = vmatpush1.msra.mxu0 %v73
  %444 = vmatprep.subr.mxu0 %v70
  %445 = vmatpush1.msra.mxu0 %v69
  %446 = vmatprep.subr.mxu0 %v66
  %447 = vmatpush1.msra.mxu0 %v65
  %448 = vmatprep.subr.mxu0 %v62
  %449 = vmatpush1.msra.mxu0 %v61
  %450 = vmatprep.subr.mxu0 %v58
  %451 = vmatpush1.msra.mxu0 %v57
  %452 = vmatprep.subr.mxu0 %v54
  %453 = vmatpush1.msra.mxu0 %v53
  %454 = vmatprep.subr.mxu0 %v50
  %455 = vmatpush1.msra.mxu0 %v49
  %456 = vmatprep.subr.mxu0 %v46
  %457 = vmatpush1.msra.mxu0 %v45
  %458 = vmatprep.subr.mxu0 %v42
  %459 = vmatpush1.msra.mxu0 %v41
  %460 = vmatprep.subr.mxu0 %v38
  %461 = vmatpush1.msra.mxu0 %v37
  %462 = vmatprep.subr.mxu0 %v34
  %463 = vmatpush1.msra.mxu0 %v33
  %464 = vmatprep.subr.mxu0 %v30
  %465 = vmatpush1.msra.mxu0 %v29
  %466 = vmatprep.subr.mxu0 %v26
  %467 = vmatpush1.msra.mxu0 %v25
  %468 = vmatprep.subr.mxu0 %v22
  %469 = vmatpush1.msra.mxu0 %v21
  %470 = vmatprep.subr.mxu0 %v18
  %471 = vmatpush1.msra.mxu0 %v17
  %472 = vmatprep.subr.mxu0 0.0
  %473 = vmatpush2.msra.mxu0 0.0
  %474 = vmatprep.subr.mxu0 0.0
  %475 = vmatpush2.msra.mxu0 0.0
  %476 = vmatprep.subr.mxu0 0.0
  %477 = vmatpush2.msra.mxu0 0.0
  %478 = vmatprep.subr.mxu0 0.0
  %479 = vmatpush2.msra.mxu0 0.0
  %480 = vmatprep.subr.mxu0 0.0
  %481 = vmatpush2.msra.mxu0 0.0
  %482 = vmatprep.subr.mxu0 0.0
  %483 = vmatpush2.msra.mxu0 0.0
  %484 = vmatprep.subr.mxu0 0.0
  %485 = vmatpush2.msra.mxu0 0.0
  %486 = vmatprep.subr.mxu0 0.0
  %487 = vmatpush2.msra.mxu0 0.0
  %488 = vmatprep.subr.mxu0 0.0
  %489 = vmatpush2.msra.mxu0 0.0
  %490 = vmatprep.subr.mxu0 0.0
  %491 = vmatpush2.msra.mxu0 0.0
  %492 = vmatprep.subr.mxu0 0.0
  %493 = vmatpush2.msra.mxu0 0.0
  %494 = vmatprep.subr.mxu0 0.0
  %495 = vmatpush2.msra.mxu0 0.0
  %496 = vmatprep.subr.mxu0 0.0
  %497 = vmatpush2.msra.mxu0 0.0
  %498 = vmatprep.subr.mxu0 0.0
  %499 = vmatpush2.msra.mxu0 0.0
  %500 = vmatprep.subr.mxu0 0.0
  %501 = vmatpush2.msra.mxu0 0.0
  %502 = vmatprep.subr.mxu0 0.0
  %503 = vmatpush2.msra.mxu0 0.0
  %504 = vmatprep.mubr.f32.mxu0 0.0
  %505 = vmatmul.mubr.f32.gmra.mxu0 %v432
  %v506 = vpop.f32.mrf.mxu0
  %v507 = vadd.f32 0.0, %v506
  %v508 = vpop.f32.mrf.mxu0
  %v509 = vadd.f32 0.0, %v508
  %510 = vdwg.mxu0
  %511 = vmatprep.subr.mxu0 %v80
  %512 = vmatpush1.msra.mxu0 %v79
  %513 = vmatprep.subr.mxu0 %v76
  %514 = vmatpush1.msra.mxu0 %v75
  %515 = vmatprep.subr.mxu0 %v72
  %516 = vmatpush1.msra.mxu0 %v71
  %517 = vmatprep.subr.mxu0 %v68
  %518 = vmatpush1.msra.mxu0 %v67
  %519 = vmatprep.subr.mxu0 %v64
  %520 = vmatpush1.msra.mxu0 %v63
  %521 = vmatprep.subr.mxu0 %v60
  %522 = vmatpush1.msra.mxu0 %v59
  %523 = vmatprep.subr.mxu0 %v56
  %524 = vmatpush1.msra.mxu0 %v55
  %525 = vmatprep.subr.mxu0 %v52
  %526 = vmatpush1.msra.mxu0 %v51
  %527 = vmatprep.subr.mxu0 %v48
  %528 = vmatpush1.msra.mxu0 %v47
  %529 = vmatprep.subr.mxu0 %v44
  %530 = vmatpush1.msra.mxu0 %v43
  %531 = vmatprep.subr.mxu0 %v40
  %532 = vmatpush1.msra.mxu0 %v39
  %533 = vmatprep.subr.mxu0 %v36
  %534 = vmatpush1.msra.mxu0 %v35
  %535 = vmatprep.subr.mxu0 %v32
  %536 = vmatpush1.msra.mxu0 %v31
  %537 = vmatprep.subr.mxu0 %v28
  %538 = vmatpush1.msra.mxu0 %v27
  %539 = vmatprep.subr.mxu0 %v24
  %540 = vmatpush1.msra.mxu0 %v23
  %541 = vmatprep.subr.mxu0 %v20
  %542 = vmatpush1.msra.mxu0 %v19
  %543 = vmatprep.subr.mxu0 0.0
  %544 = vmatpush2.msra.mxu0 0.0
  %545 = vmatprep.subr.mxu0 0.0
  %546 = vmatpush2.msra.mxu0 0.0
  %547 = vmatprep.subr.mxu0 0.0
  %548 = vmatpush2.msra.mxu0 0.0
  %549 = vmatprep.subr.mxu0 0.0
  %550 = vmatpush2.msra.mxu0 0.0
  %551 = vmatprep.subr.mxu0 0.0
  %552 = vmatpush2.msra.mxu0 0.0
  %553 = vmatprep.subr.mxu0 0.0
  %554 = vmatpush2.msra.mxu0 0.0
  %555 = vmatprep.subr.mxu0 0.0
  %556 = vmatpush2.msra.mxu0 0.0
  %557 = vmatprep.subr.mxu0 0.0
  %558 = vmatpush2.msra.mxu0 0.0
  %559 = vmatprep.subr.mxu0 0.0
  %560 = vmatpush2.msra.mxu0 0.0
  %561 = vmatprep.subr.mxu0 0.0
  %562 = vmatpush2.msra.mxu0 0.0
  %563 = vmatprep.subr.mxu0 0.0
  %564 = vmatpush2.msra.mxu0 0.0
  %565 = vmatprep.subr.mxu0 0.0
  %566 = vmatpush2.msra.mxu0 0.0
  %567 = vmatprep.subr.mxu0 0.0
  %568 = vmatpush2.msra.mxu0 0.0
  %569 = vmatprep.subr.mxu0 0.0
  %570 = vmatpush2.msra.mxu0 0.0
  %571 = vmatprep.subr.mxu0 0.0
  %572 = vmatpush2.msra.mxu0 0.0
  %573 = vmatprep.subr.mxu0 0.0
  %574 = vmatpush2.msra.mxu0 0.0
  %575 = vmatprep.mubr.f32.mxu0 0.0
  %576 = vmatmul.mubr.f32.gmra.mxu0 %v432
  %v577 = vpop.f32.mrf.mxu0
  %v578 = vadd.f32 0.0, %v577
  %v579 = vpop.f32.mrf.mxu0
  %v580 = vadd.f32 0.0, %v579
  %581 = vdwg.mxu0
  %v582 = vadd.f32 %v436, %v507
  %v583 = vadd.f32 %v437, %v509
  %v584 = vadd.f32 %v438, %v578
  %v585 = vadd.f32 %v439, %v580
  %v586 = vxor.u32 %v582, 2147483648
  %v587 = vmul.f32 %v586, 1.442695
  %v588 = vpow.pop %v587
  %v589 = vadd.f32 %v588, 1.0
  %v590 = vrcp.pop %v589
  %v591 = vmul.f32 1.0, %v590
  %v592 = vxor.u32 %v583, 2147483648
  %v593 = vmul.f32 %v592, 1.442695
  %v594 = vpow.pop %v593
  %v595 = vadd.f32 %v594, 1.0
  %v596 = vrcp.pop %v595
  %v597 = vmul.f32 1.0, %v596
  %v598 = vtanh.pop %v584
  %v599 = vxor.u32 %v585, 2147483648
  %v600 = vmul.f32 %v599, 1.442695
  %v601 = vpow.pop %v600
  %v602 = vadd.f32 %v601, 1.0
  %v603 = vrcp.pop %v602
  %v604 = vmul.f32 1.0, %v603
  %v605 = vmul.f32 %v597, %v430
  %v606 = vmul.f32 %v591, %v598
  %v607 = vadd.f32 %v605, %v606
  %v608 = vtanh.pop %v607
  %v609 = vmul.f32 %v604, %v608
  %s610 = scalar_lea.vmem %s2, 16
  %611 = vst [vmem:[%s610] sm:$0xff] %v609
  %s612 = scalar_lea.vmem %s0, 96
  %v613 = vld [vmem:[%s612] sm:$0xff]
  %v614 = vld [vmem:[%s612 + $0x8] sm:$0xff]
  %v615 = vld [vmem:[%s612 + $0x10] sm:$0xff]
  %v616 = vld [vmem:[%s612 + $0x18] sm:$0xff]
  %617 = vmatprep.subr.mxu0 %v78
  %618 = vmatpush1.msra.mxu0 %v77
  %619 = vmatprep.subr.mxu0 %v74
  %620 = vmatpush1.msra.mxu0 %v73
  %621 = vmatprep.subr.mxu0 %v70
  %622 = vmatpush1.msra.mxu0 %v69
  %623 = vmatprep.subr.mxu0 %v66
  %624 = vmatpush1.msra.mxu0 %v65
  %625 = vmatprep.subr.mxu0 %v62
  %626 = vmatpush1.msra.mxu0 %v61
  %627 = vmatprep.subr.mxu0 %v58
  %628 = vmatpush1.msra.mxu0 %v57
  %629 = vmatprep.subr.mxu0 %v54
  %630 = vmatpush1.msra.mxu0 %v53
  %631 = vmatprep.subr.mxu0 %v50
  %632 = vmatpush1.msra.mxu0 %v49
  %633 = vmatprep.subr.mxu0 %v46
  %634 = vmatpush1.msra.mxu0 %v45
  %635 = vmatprep.subr.mxu0 %v42
  %636 = vmatpush1.msra.mxu0 %v41
  %637 = vmatprep.subr.mxu0 %v38
  %638 = vmatpush1.msra.mxu0 %v37
  %639 = vmatprep.subr.mxu0 %v34
  %640 = vmatpush1.msra.mxu0 %v33
  %641 = vmatprep.subr.mxu0 %v30
  %642 = vmatpush1.msra.mxu0 %v29
  %643 = vmatprep.subr.mxu0 %v26
  %644 = vmatpush1.msra.mxu0 %v25
  %645 = vmatprep.subr.mxu0 %v22
  %646 = vmatpush1.msra.mxu0 %v21
  %647 = vmatprep.subr.mxu0 %v18
  %648 = vmatpush1.msra.mxu0 %v17
  %649 = vmatprep.subr.mxu0 0.0
  %650 = vmatpush2.msra.mxu0 0.0
  %651 = vmatprep.subr.mxu0 0.0
  %652 = vmatpush2.msra.mxu0 0.0
  %653 = vmatprep.subr.mxu0 0.0
  %654 = vmatpush2.msra.mxu0 0.0
  %655 = vmatprep.subr.mxu0 0.0
  %656 = vmatpush2.msra.mxu0 0.0
  %657 = vmatprep.subr.mxu0 0.0
  %658 = vmatpush2.msra.mxu0 0.0
  %659 = vmatprep.subr.mxu0 0.0
  %660 = vmatpush2.msra.mxu0 0.0
  %661 = vmatprep.subr.mxu0 0.0
  %662 = vmatpush2.msra.mxu0 0.0
  %663 = vmatprep.subr.mxu0 0.0
  %664 = vmatpush2.msra.mxu0 0.0
  %665 = vmatprep.subr.mxu0 0.0
  %666 = vmatpush2.msra.mxu0 0.0
  %667 = vmatprep.subr.mxu0 0.0
  %668 = vmatpush2.msra.mxu0 0.0
  %669 = vmatprep.subr.mxu0 0.0
  %670 = vmatpush2.msra.mxu0 0.0
  %671 = vmatprep.subr.mxu0 0.0
  %672 = vmatpush2.msra.mxu0 0.0
  %673 = vmatprep.subr.mxu0 0.0
  %674 = vmatpush2.msra.mxu0 0.0
  %675 = vmatprep.subr.mxu0 0.0
  %676 = vmatpush2.msra.mxu0 0.0
  %677 = vmatprep.subr.mxu0 0.0
  %678 = vmatpush2.msra.mxu0 0.0
  %679 = vmatprep.subr.mxu0 0.0
  %680 = vmatpush2.msra.mxu0 0.0
  %681 = vmatprep.mubr.f32.mxu0 0.0
  %682 = vmatmul.mubr.f32.gmra.mxu0 %v609
  %v683 = vpop.f32.mrf.mxu0
  %v684 = vadd.f32 0.0, %v683
  %v685 = vpop.f32.mrf.mxu0
  %v686 = vadd.f32 0.0, %v685
  %687 = vdwg.mxu0
  %688 = vmatprep.subr.mxu0 %v80
  %689 = vmatpush1.msra.mxu0 %v79
  %690 = vmatprep.subr.mxu0 %v76
  %691 = vmatpush1.msra.mxu0 %v75
  %692 = vmatprep.subr.mxu0 %v72
  %693 = vmatpush1.msra.mxu0 %v71
  %694 = vmatprep.subr.mxu0 %v68
  %695 = vmatpush1.msra.mxu0 %v67
  %696 = vmatprep.subr.mxu0 %v64
  %697 = vmatpush1.msra.mxu0 %v63
  %698 = vmatprep.subr.mxu0 %v60
  %699 = vmatpush1.msra.mxu0 %v59
  %700 = vmatprep.subr.mxu0 %v56
  %701 = vmatpush1.msra.mxu0 %v55
  %702 = vmatprep.subr.mxu0 %v52
  %703 = vmatpush1.msra.mxu0 %v51
  %704 = vmatprep.subr.mxu0 %v48
  %705 = vmatpush1.msra.mxu0 %v47
  %706 = vmatprep.subr.mxu0 %v44
  %707 = vmatpush1.msra.mxu0 %v43
  %708 = vmatprep.subr.mxu0 %v40
  %709 = vmatpush1.msra.mxu0 %v39
  %710 = vmatprep.subr.mxu0 %v36
  %711 = vmatpush1.msra.mxu0 %v35
  %712 = vmatprep.subr.mxu0 %v32
  %713 = vmatpush1.msra.mxu0 %v31
  %714 = vmatprep.subr.mxu0 %v28
  %715 = vmatpush1.msra.mxu0 %v27
  %716 = vmatprep.subr.mxu0 %v24
  %717 = vmatpush1.msra.mxu0 %v23
  %718 = vmatprep.subr.mxu0 %v20
  %719 = vmatpush1.msra.mxu0 %v19
  %720 = vmatprep.subr.mxu0 0.0
  %721 = vmatpush2.msra.mxu0 0.0
  %722 = vmatprep.subr.mxu0 0.0
  %723 = vmatpush2.msra.mxu0 0.0
  %724 = vmatprep.subr.mxu0 0.0
  %725 = vmatpush2.msra.mxu0 0.0
  %726 = vmatprep.subr.mxu0 0.0
  %727 = vmatpush2.msra.mxu0 0.0
  %728 = vmatprep.subr.mxu0 0.0
  %729 = vmatpush2.msra.mxu0 0.0
  %730 = vmatprep.subr.mxu0 0.0
  %731 = vmatpush2.msra.mxu0 0.0
  %732 = vmatprep.subr.mxu0 0.0
  %733 = vmatpush2.msra.mxu0 0.0
  %734 = vmatprep.subr.mxu0 0.0
  %735 = vmatpush2.msra.mxu0 0.0
  %736 = vmatprep.subr.mxu0 0.0
  %737 = vmatpush2.msra.mxu0 0.0
  %738 = vmatprep.subr.mxu0 0.0
  %739 = vmatpush2.msra.mxu0 0.0
  %740 = vmatprep.subr.mxu0 0.0
  %741 = vmatpush2.msra.mxu0 0.0
  %742 = vmatprep.subr.mxu0 0.0
  %743 = vmatpush2.msra.mxu0 0.0
  %744 = vmatprep.subr.mxu0 0.0
  %745 = vmatpush2.msra.mxu0 0.0
  %746 = vmatprep.subr.mxu0 0.0
  %747 = vmatpush2.msra.mxu0 0.0
  %748 = vmatprep.subr.mxu0 0.0
  %749 = vmatpush2.msra.mxu0 0.0
  %750 = vmatprep.subr.mxu0 0.0
  %751 = vmatpush2.msra.mxu0 0.0
  %752 = vmatprep.mubr.f32.mxu0 0.0
  %753 = vmatmul.mubr.f32.gmra.mxu0 %v609
  %v754 = vpop.f32.mrf.mxu0
  %v755 = vadd.f32 0.0, %v754
  %v756 = vpop.f32.mrf.mxu0
  %v757 = vadd.f32 0.0, %v756
  %758 = vdwg.mxu0
  %v759 = vadd.f32 %v613, %v684
  %v760 = vadd.f32 %v614, %v686
  %v761 = vadd.f32 %v615, %v755
  %v762 = vadd.f32 %v616, %v757
  %v763 = vxor.u32 %v759, 2147483648
  %v764 = vmul.f32 %v763, 1.442695
  %v765 = vpow.pop %v764
  %v766 = vadd.f32 %v765, 1.0
  %v767 = vrcp.pop %v766
  %v768 = vmul.f32 1.0, %v767
  %v769 = vxor.u32 %v760, 2147483648
  %v770 = vmul.f32 %v769, 1.442695
  %v771 = vpow.pop %v770
  %v772 = vadd.f32 %v771, 1.0
  %v773 = vrcp.pop %v772
  %v774 = vmul.f32 1.0, %v773
  %v775 = vtanh.pop %v761
  %v776 = vxor.u32 %v762, 2147483648
  %v777 = vmul.f32 %v776, 1.442695
  %v778 = vpow.pop %v777
  %v779 = vadd.f32 %v778, 1.0
  %v780 = vrcp.pop %v779
  %v781 = vmul.f32 1.0, %v780
  %v782 = vmul.f32 %v774, %v607
  %v783 = vmul.f32 %v768, %v775
  %v784 = vadd.f32 %v782, %v783
  %v785 = vtanh.pop %v784
  %v786 = vmul.f32 %v781, %v785
  %s787 = scalar_lea.vmem %s2, 24
  %788 = vst [vmem:[%s787] sm:$0xff] %v786
  %s789 = scalar_lea.vmem %s0, 128
  %v790 = vld [vmem:[%s789] sm:$0xff]
  %v791 = vld [vmem:[%s789 + $0x8] sm:$0xff]
  %v792 = vld [vmem:[%s789 + $0x10] sm:$0xff]
  %v793 = vld [vmem:[%s789 + $0x18] sm:$0xff]
  %794 = vmatprep.subr.mxu0 %v78
  %795 = vmatpush1.msra.mxu0 %v77
  %796 = vmatprep.subr.mxu0 %v74
  %797 = vmatpush1.msra.mxu0 %v73
  %798 = vmatprep.subr.mxu0 %v70
  %799 = vmatpush1.msra.mxu0 %v69
  %800 = vmatprep.subr.mxu0 %v66
  %801 = vmatpush1.msra.mxu0 %v65
  %802 = vmatprep.subr.mxu0 %v62
  %803 = vmatpush1.msra.mxu0 %v61
  %804 = vmatprep.subr.mxu0 %v58
  %805 = vmatpush1.msra.mxu0 %v57
  %806 = vmatprep.subr.mxu0 %v54
  %807 = vmatpush1.msra.mxu0 %v53
  %808 = vmatprep.subr.mxu0 %v50
  %809 = vmatpush1.msra.mxu0 %v49
  %810 = vmatprep.subr.mxu0 %v46
  %811 = vmatpush1.msra.mxu0 %v45
  %812 = vmatprep.subr.mxu0 %v42
  %813 = vmatpush1.msra.mxu0 %v41
  %814 = vmatprep.subr.mxu0 %v38
  %815 = vmatpush1.msra.mxu0 %v37
  %816 = vmatprep.subr.mxu0 %v34
  %817 = vmatpush1.msra.mxu0 %v33
  %818 = vmatprep.subr.mxu0 %v30
  %819 = vmatpush1.msra.mxu0 %v29
  %820 = vmatprep.subr.mxu0 %v26
  %821 = vmatpush1.msra.mxu0 %v25
  %822 = vmatprep.subr.mxu0 %v22
  %823 = vmatpush1.msra.mxu0 %v21
  %824 = vmatprep.subr.mxu0 %v18
  %825 = vmatpush1.msra.mxu0 %v17
  %826 = vmatprep.subr.mxu0 0.0
  %827 = vmatpush2.msra.mxu0 0.0
  %828 = vmatprep.subr.mxu0 0.0
  %829 = vmatpush2.msra.mxu0 0.0
  %830 = vmatprep.subr.mxu0 0.0
  %831 = vmatpush2.msra.mxu0 0.0
  %832 = vmatprep.subr.mxu0 0.0
  %833 = vmatpush2.msra.mxu0 0.0
  %834 = vmatprep.subr.mxu0 0.0
  %835 = vmatpush2.msra.mxu0 0.0
  %836 = vmatprep.subr.mxu0 0.0
  %837 = vmatpush2.msra.mxu0 0.0
  %838 = vmatprep.subr.mxu0 0.0
  %839 = vmatpush2.msra.mxu0 0.0
  %840 = vmatprep.subr.mxu0 0.0
  %841 = vmatpush2.msra.mxu0 0.0
  %842 = vmatprep.subr.mxu0 0.0
  %843 = vmatpush2.msra.mxu0 0.0
  %844 = vmatprep.subr.mxu0 0.0
  %845 = vmatpush2.msra.mxu0 0.0
  %846 = vmatprep.subr.mxu0 0.0
  %847 = vmatpush2.msra.mxu0 0.0
  %848 = vmatprep.subr.mxu0 0.0
  %849 = vmatpush2.msra.mxu0 0.0
  %850 = vmatprep.subr.mxu0 0.0
  %851 = vmatpush2.msra.mxu0 0.0
  %852 = vmatprep.subr.mxu0 0.0
  %853 = vmatpush2.msra.mxu0 0.0
  %854 = vmatprep.subr.mxu0 0.0
  %855 = vmatpush2.msra.mxu0 0.0
  %856 = vmatprep.subr.mxu0 0.0
  %857 = vmatpush2.msra.mxu0 0.0
  %858 = vmatprep.mubr.f32.mxu0 0.0
  %859 = vmatmul.mubr.f32.gmra.mxu0 %v786
  %v860 = vpop.f32.mrf.mxu0
  %v861 = vadd.f32 0.0, %v860
  %v862 = vpop.f32.mrf.mxu0
  %v863 = vadd.f32 0.0, %v862
  %864 = vdwg.mxu0
  %865 = vmatprep.subr.mxu0 %v80
  %866 = vmatpush1.msra.mxu0 %v79
  %867 = vmatprep.subr.mxu0 %v76
  %868 = vmatpush1.msra.mxu0 %v75
  %869 = vmatprep.subr.mxu0 %v72
  %870 = vmatpush1.msra.mxu0 %v71
  %871 = vmatprep.subr.mxu0 %v68
  %872 = vmatpush1.msra.mxu0 %v67
  %873 = vmatprep.subr.mxu0 %v64
  %874 = vmatpush1.msra.mxu0 %v63
  %875 = vmatprep.subr.mxu0 %v60
  %876 = vmatpush1.msra.mxu0 %v59
  %877 = vmatprep.subr.mxu0 %v56
  %878 = vmatpush1.msra.mxu0 %v55
  %879 = vmatprep.subr.mxu0 %v52
  %880 = vmatpush1.msra.mxu0 %v51
  %881 = vmatprep.subr.mxu0 %v48
  %882 = vmatpush1.msra.mxu0 %v47
  %883 = vmatprep.subr.mxu0 %v44
  %884 = vmatpush1.msra.mxu0 %v43
  %885 = vmatprep.subr.mxu0 %v40
  %886 = vmatpush1.msra.mxu0 %v39
  %887 = vmatprep.subr.mxu0 %v36
  %888 = vmatpush1.msra.mxu0 %v35
  %889 = vmatprep.subr.mxu0 %v32
  %890 = vmatpush1.msra.mxu0 %v31
  %891 = vmatprep.subr.mxu0 %v28
  %892 = vmatpush1.msra.mxu0 %v27
  %893 = vmatprep.subr.mxu0 %v24
  %894 = vmatpush1.msra.mxu0 %v23
  %895 = vmatprep.subr.mxu0 %v20
  %896 = vmatpush1.msra.mxu0 %v19
  %897 = vmatprep.subr.mxu0 0.0
  %898 = vmatpush2.msra.mxu0 0.0
  %899 = vmatprep.subr.mxu0 0.0
  %900 = vmatpush2.msra.mxu0 0.0
  %901 = vmatprep.subr.mxu0 0.0
  %902 = vmatpush2.msra.mxu0 0.0
  %903 = vmatprep.subr.mxu0 0.0
  %904 = vmatpush2.msra.mxu0 0.0
  %905 = vmatprep.subr.mxu0 0.0
  %906 = vmatpush2.msra.mxu0 0.0
  %907 = vmatprep.subr.mxu0 0.0
  %908 = vmatpush2.msra.mxu0 0.0
  %909 = vmatprep.subr.mxu0 0.0
  %910 = vmatpush2.msra.mxu0 0.0
  %911 = vmatprep.subr.mxu0 0.0
  %912 = vmatpush2.msra.mxu0 0.0
  %913 = vmatprep.subr.mxu0 0.0
  %914 = vmatpush2.msra.mxu0 0.0
  %915 = vmatprep.subr.mxu0 0.0
  %916 = vmatpush2.msra.mxu0 0.0
  %917 = vmatprep.subr.mxu0 0.0
  %918 = vmatpush2.msra.mxu0 0.0
  %919 = vmatprep.subr.mxu0 0.0
  %920 = vmatpush2.msra.mxu0 0.0
  %921 = vmatprep.subr.mxu0 0.0
  %922 = vmatpush2.msra.mxu0 0.0
  %923 = vmatprep.subr.mxu0 0.0
  %924 = vmatpush2.msra.mxu0 0.0
  %925 = vmatprep.subr.mxu0 0.0
  %926 = vmatpush2.msra.mxu0 0.0
  %927 = vmatprep.subr.mxu0 0.0
  %928 = vmatpush2.msra.mxu0 0.0
  %929 = vmatprep.mubr.f32.mxu0 0.0
  %930 = vmatmul.mubr.f32.gmra.mxu0 %v786
  %v931 = vpop.f32.mrf.mxu0
  %v932 = vadd.f32 0.0, %v931
  %v933 = vpop.f32.mrf.mxu0
  %v934 = vadd.f32 0.0, %v933
  %935 = vdwg.mxu0
  %v936 = vadd.f32 %v790, %v861
  %v937 = vadd.f32 %v791, %v863
  %v938 = vadd.f32 %v792, %v932
  %v939 = vadd.f32 %v793, %v934
  %v940 = vxor.u32 %v936, 2147483648
  %v941 = vmul.f32 %v940, 1.442695
  %v942 = vpow.pop %v941
  %v943 = vadd.f32 %v942, 1.0
  %v944 = vrcp.pop %v943
  %v945 = vmul.f32 1.0, %v944
  %v946 = vxor.u32 %v937, 2147483648
  %v947 = vmul.f32 %v946, 1.442695
  %v948 = vpow.pop %v947
  %v949 = vadd.f32 %v948, 1.0
  %v950 = vrcp.pop %v949
  %v951 = vmul.f32 1.0, %v950
  %v952 = vtanh.pop %v938
  %v953 = vxor.u32 %v939, 2147483648
  %v954 = vmul.f32 %v953, 1.442695
  %v955 = vpow.pop %v954
  %v956 = vadd.f32 %v955, 1.0
  %v957 = vrcp.pop %v956
  %v958 = vmul.f32 1.0, %v957
  %v959 = vmul.f32 %v951, %v784
  %v960 = vmul.f32 %v945, %v952
  %v961 = vadd.f32 %v959, %v960
  %v962 = vtanh.pop %v961
  %v963 = vmul.f32 %v958, %v962
  %s964 = scalar_lea.vmem %s2, 32
  %965 = vst [vmem:[%s964] sm:$0xff] %v963
  %s966 = scalar_lea.vmem %s0, 160
  %v967 = vld [vmem:[%s966] sm:$0xff]
  %v968 = vld [vmem:[%s966 + $0x8] sm:$0xff]
  %v969 = vld [vmem:[%s966 + $0x10] sm:$0xff]
  %v970 = vld [vmem:[%s966 + $0x18] sm:$0xff]
  %971 = vmatprep.subr.mxu0 %v78
  %972 = vmatpush1.msra.mxu0 %v77
  %973 = vmatprep.subr.mxu0 %v74
  %974 = vmatpush1.msra.mxu0 %v73
  %975 = vmatprep.subr.mxu0 %v70
  %976 = vmatpush1.msra.mxu0 %v69
  %977 = vmatprep.subr.mxu0 %v66
  %978 = vmatpush1.msra.mxu0 %v65
  %979 = vmatprep.subr.mxu0 %v62
  %980 = vmatpush1.msra.mxu0 %v61
  %981 = vmatprep.subr.mxu0 %v58
  %982 = vmatpush1.msra.mxu0 %v57
  %983 = vmatprep.subr.mxu0 %v54
  %984 = vmatpush1.msra.mxu0 %v53
  %985 = vmatprep.subr.mxu0 %v50
  %986 = vmatpush1.msra.mxu0 %v49
  %987 = vmatprep.subr.mxu0 %v46
  %988 = vmatpush1.msra.mxu0 %v45
  %989 = vmatprep.subr.mxu0 %v42
  %990 = vmatpush1.msra.mxu0 %v41
  %991 = vmatprep.subr.mxu0 %v38
  %992 = vmatpush1.msra.mxu0 %v37
  %993 = vmatprep.subr.mxu0 %v34
  %994 = vmatpush1.msra.mxu0 %v33
  %995 = vmatprep.subr.mxu0 %v30
  %996 = vmatpush1.msra.mxu0 %v29
  %997 = vmatprep.subr.mxu0 %v26
  %998 = vmatpush1.msra.mxu0 %v25
  %999 = vmatprep.subr.mxu0 %v22
  %1000 = vmatpush1.msra.mxu0 %v21
  %1001 = vmatprep.subr.mxu0 %v18
  %1002 = vmatpush1.msra.mxu0 %v17
  %1003 = vmatprep.subr.mxu0 0.0
  %1004 = vmatpush2.msra.mxu0 0.0
  %1005 = vmatprep.subr.mxu0 0.0
  %1006 = vmatpush2.msra.mxu0 0.0
  %1007 = vmatprep.subr.mxu0 0.0
  %1008 = vmatpush2.msra.mxu0 0.0
  %1009 = vmatprep.subr.mxu0 0.0
  %1010 = vmatpush2.msra.mxu0 0.0
  %1011 = vmatprep.subr.mxu0 0.0
  %1012 = vmatpush2.msra.mxu0 0.0
  %1013 = vmatprep.subr.mxu0 0.0
  %1014 = vmatpush2.msra.mxu0 0.0
  %1015 = vmatprep.subr.mxu0 0.0
  %1016 = vmatpush2.msra.mxu0 0.0
  %1017 = vmatprep.subr.mxu0 0.0
  %1018 = vmatpush2.msra.mxu0 0.0
  %1019 = vmatprep.subr.mxu0 0.0
  %1020 = vmatpush2.msra.mxu0 0.0
  %1021 = vmatprep.subr.mxu0 0.0
  %1022 = vmatpush2.msra.mxu0 0.0
  %1023 = vmatprep.subr.mxu0 0.0
  %1024 = vmatpush2.msra.mxu0 0.0
  %1025 = vmatprep.subr.mxu0 0.0
  %1026 = vmatpush2.msra.mxu0 0.0
  %1027 = vmatprep.subr.mxu0 0.0
  %1028 = vmatpush2.msra.mxu0 0.0
  %1029 = vmatprep.subr.mxu0 0.0
  %1030 = vmatpush2.msra.mxu0 0.0
  %1031 = vmatprep.subr.mxu0 0.0
  %1032 = vmatpush2.msra.mxu0 0.0
  %1033 = vmatprep.subr.mxu0 0.0
  %1034 = vmatpush2.msra.mxu0 0.0
  %1035 = vmatprep.mubr.f32.mxu0 0.0
  %1036 = vmatmul.mubr.f32.gmra.mxu0 %v963
  %v1037 = vpop.f32.mrf.mxu0
  %v1038 = vadd.f32 0.0, %v1037
  %v1039 = vpop.f32.mrf.mxu0
  %v1040 = vadd.f32 0.0, %v1039
  %1041 = vdwg.mxu0
  %1042 = vmatprep.subr.mxu0 %v80
  %1043 = vmatpush1.msra.mxu0 %v79
  %1044 = vmatprep.subr.mxu0 %v76
  %1045 = vmatpush1.msra.mxu0 %v75
  %1046 = vmatprep.subr.mxu0 %v72
  %1047 = vmatpush1.msra.mxu0 %v71
  %1048 = vmatprep.subr.mxu0 %v68
  %1049 = vmatpush1.msra.mxu0 %v67
  %1050 = vmatprep.subr.mxu0 %v64
  %1051 = vmatpush1.msra.mxu0 %v63
  %1052 = vmatprep.subr.mxu0 %v60
  %1053 = vmatpush1.msra.mxu0 %v59
  %1054 = vmatprep.subr.mxu0 %v56
  %1055 = vmatpush1.msra.mxu0 %v55
  %1056 = vmatprep.subr.mxu0 %v52
  %1057 = vmatpush1.msra.mxu0 %v51
  %1058 = vmatprep.subr.mxu0 %v48
  %1059 = vmatpush1.msra.mxu0 %v47
  %1060 = vmatprep.subr.mxu0 %v44
  %1061 = vmatpush1.msra.mxu0 %v43
  %1062 = vmatprep.subr.mxu0 %v40
  %1063 = vmatpush1.msra.mxu0 %v39
  %1064 = vmatprep.subr.mxu0 %v36
  %1065 = vmatpush1.msra.mxu0 %v35
  %1066 = vmatprep.subr.mxu0 %v32
  %1067 = vmatpush1.msra.mxu0 %v31
  %1068 = vmatprep.subr.mxu0 %v28
  %1069 = vmatpush1.msra.mxu0 %v27
  %1070 = vmatprep.subr.mxu0 %v24
  %1071 = vmatpush1.msra.mxu0 %v23
  %1072 = vmatprep.subr.mxu0 %v20
  %1073 = vmatpush1.msra.mxu0 %v19
  %1074 = vmatprep.subr.mxu0 0.0
  %1075 = vmatpush2.msra.mxu0 0.0
  %1076 = vmatprep.subr.mxu0 0.0
  %1077 = vmatpush2.msra.mxu0 0.0
  %1078 = vmatprep.subr.mxu0 0.0
  %1079 = vmatpush2.msra.mxu0 0.0
  %1080 = vmatprep.subr.mxu0 0.0
  %1081 = vmatpush2.msra.mxu0 0.0
  %1082 = vmatprep.subr.mxu0 0.0
  %1083 = vmatpush2.msra.mxu0 0.0
  %1084 = vmatprep.subr.mxu0 0.0
  %1085 = vmatpush2.msra.mxu0 0.0
  %1086 = vmatprep.subr.mxu0 0.0
  %1087 = vmatpush2.msra.mxu0 0.0
  %1088 = vmatprep.subr.mxu0 0.0
  %1089 = vmatpush2.msra.mxu0 0.0
  %1090 = vmatprep.subr.mxu0 0.0
  %1091 = vmatpush2.msra.mxu0 0.0
  %1092 = vmatprep.subr.mxu0 0.0
  %1093 = vmatpush2.msra.mxu0 0.0
  %1094 = vmatprep.subr.mxu0 0.0
  %1095 = vmatpush2.msra.mxu0 0.0
  %1096 = vmatprep.subr.mxu0 0.0
  %1097 = vmatpush2.msra.mxu0 0.0
  %1098 = vmatprep.subr.mxu0 0.0
  %1099 = vmatpush2.msra.mxu0 0.0
  %1100 = vmatprep.subr.mxu0 0.0
  %1101 = vmatpush2.msra.mxu0 0.0
  %1102 = vmatprep.subr.mxu0 0.0
  %1103 = vmatpush2.msra.mxu0 0.0
  %1104 = vmatprep.subr.mxu0 0.0
  %1105 = vmatpush2.msra.mxu0 0.0
  %1106 = vmatprep.mubr.f32.mxu0 0.0
  %1107 = vmatmul.mubr.f32.gmra.mxu0 %v963
  %v1108 = vpop.f32.mrf.mxu0
  %v1109 = vadd.f32 0.0, %v1108
  %v1110 = vpop.f32.mrf.mxu0
  %v1111 = vadd.f32 0.0, %v1110
  %1112 = vdwg.mxu0
  %v1113 = vadd.f32 %v967, %v1038
  %v1114 = vadd.f32 %v968, %v1040
  %v1115 = vadd.f32 %v969, %v1109
  %v1116 = vadd.f32 %v970, %v1111
  %v1117 = vxor.u32 %v1113, 2147483648
  %v1118 = vmul.f32 %v1117, 1.442695
  %v1119 = vpow.pop %v1118
  %v1120 = vadd.f32 %v1119, 1.0
  %v1121 = vrcp.pop %v1120
  %v1122 = vmul.f32 1.0, %v1121
  %v1123 = vxor.u32 %v1114, 2147483648
  %v1124 = vmul.f32 %v1123, 1.442695
  %v1125 = vpow.pop %v1124
  %v1126 = vadd.f32 %v1125, 1.0
  %v1127 = vrcp.pop %v1126
  %v1128 = vmul.f32 1.0, %v1127
  %v1129 = vtanh.pop %v1115
  %v1130 = vxor.u32 %v1116, 2147483648
  %v1131 = vmul.f32 %v1130, 1.442695
  %v1132 = vpow.pop %v1131
  %v1133 = vadd.f32 %v1132, 1.0
  %v1134 = vrcp.pop %v1133
  %v1135 = vmul.f32 1.0, %v1134
  %v1136 = vmul.f32 %v1128, %v961
  %v1137 = vmul.f32 %v1122, %v1129
  %v1138 = vadd.f32 %v1136, %v1137
  %v1139 = vtanh.pop %v1138
  %v1140 = vmul.f32 %v1135, %v1139
  %s1141 = scalar_lea.vmem %s2, 40
  %1142 = vst [vmem:[%s1141] sm:$0xff] %v1140
  %s1143 = scalar_lea.vmem %s0, 192
  %v1144 = vld [vmem:[%s1143] sm:$0xff]
  %v1145 = vld [vmem:[%s1143 + $0x8] sm:$0xff]
  %v1146 = vld [vmem:[%s1143 + $0x10] sm:$0xff]
  %v1147 = vld [vmem:[%s1143 + $0x18] sm:$0xff]
  %1148 = vmatprep.subr.mxu0 %v78
  %1149 = vmatpush1.msra.mxu0 %v77
  %1150 = vmatprep.subr.mxu0 %v74
  %1151 = vmatpush1.msra.mxu0 %v73
  %1152 = vmatprep.subr.mxu0 %v70
  %1153 = vmatpush1.msra.mxu0 %v69
  %1154 = vmatprep.subr.mxu0 %v66
  %1155 = vmatpush1.msra.mxu0 %v65
  %1156 = vmatprep.subr.mxu0 %v62
  %1157 = vmatpush1.msra.mxu0 %v61
  %1158 = vmatprep.subr.mxu0 %v58
  %1159 = vmatpush1.msra.mxu0 %v57
  %1160 = vmatprep.subr.mxu0 %v54
  %1161 = vmatpush1.msra.mxu0 %v53
  %1162 = vmatprep.subr.mxu0 %v50
  %1163 = vmatpush1.msra.mxu0 %v49
  %1164 = vmatprep.subr.mxu0 %v46
  %1165 = vmatpush1.msra.mxu0 %v45
  %1166 = vmatprep.subr.mxu0 %v42
  %1167 = vmatpush1.msra.mxu0 %v41
  %1168 = vmatprep.subr.mxu0 %v38
  %1169 = vmatpush1.msra.mxu0 %v37
  %1170 = vmatprep.subr.mxu0 %v34
  %1171 = vmatpush1.msra.mxu0 %v33
  %1172 = vmatprep.subr.mxu0 %v30
  %1173 = vmatpush1.msra.mxu0 %v29
  %1174 = vmatprep.subr.mxu0 %v26
  %1175 = vmatpush1.msra.mxu0 %v25
  %1176 = vmatprep.subr.mxu0 %v22
  %1177 = vmatpush1.msra.mxu0 %v21
  %1178 = vmatprep.subr.mxu0 %v18
  %1179 = vmatpush1.msra.mxu0 %v17
  %1180 = vmatprep.subr.mxu0 0.0
  %1181 = vmatpush2.msra.mxu0 0.0
  %1182 = vmatprep.subr.mxu0 0.0
  %1183 = vmatpush2.msra.mxu0 0.0
  %1184 = vmatprep.subr.mxu0 0.0
  %1185 = vmatpush2.msra.mxu0 0.0
  %1186 = vmatprep.subr.mxu0 0.0
  %1187 = vmatpush2.msra.mxu0 0.0
  %1188 = vmatprep.subr.mxu0 0.0
  %1189 = vmatpush2.msra.mxu0 0.0
  %1190 = vmatprep.subr.mxu0 0.0
  %1191 = vmatpush2.msra.mxu0 0.0
  %1192 = vmatprep.subr.mxu0 0.0
  %1193 = vmatpush2.msra.mxu0 0.0
  %1194 = vmatprep.subr.mxu0 0.0
  %1195 = vmatpush2.msra.mxu0 0.0
  %1196 = vmatprep.subr.mxu0 0.0
  %1197 = vmatpush2.msra.mxu0 0.0
  %1198 = vmatprep.subr.mxu0 0.0
  %1199 = vmatpush2.msra.mxu0 0.0
  %1200 = vmatprep.subr.mxu0 0.0
  %1201 = vmatpush2.msra.mxu0 0.0
  %1202 = vmatprep.subr.mxu0 0.0
  %1203 = vmatpush2.msra.mxu0 0.0
  %1204 = vmatprep.subr.mxu0 0.0
  %1205 = vmatpush2.msra.mxu0 0.0
  %1206 = vmatprep.subr.mxu0 0.0
  %1207 = vmatpush2.msra.mxu0 0.0
  %1208 = vmatprep.subr.mxu0 0.0
  %1209 = vmatpush2.msra.mxu0 0.0
  %1210 = vmatprep.subr.mxu0 0.0
  %1211 = vmatpush2.msra.mxu0 0.0
  %1212 = vmatprep.mubr.f32.mxu0 0.0
  %1213 = vmatmul.mubr.f32.gmra.mxu0 %v1140
  %v1214 = vpop.f32.mrf.mxu0
  %v1215 = vadd.f32 0.0, %v1214
  %v1216 = vpop.f32.mrf.mxu0
  %v1217 = vadd.f32 0.0, %v1216
  %1218 = vdwg.mxu0
  %1219 = vmatprep.subr.mxu0 %v80
  %1220 = vmatpush1.msra.mxu0 %v79
  %1221 = vmatprep.subr.mxu0 %v76
  %1222 = vmatpush1.msra.mxu0 %v75
  %1223 = vmatprep.subr.mxu0 %v72
  %1224 = vmatpush1.msra.mxu0 %v71
  %1225 = vmatprep.subr.mxu0 %v68
  %1226 = vmatpush1.msra.mxu0 %v67
  %1227 = vmatprep.subr.mxu0 %v64
  %1228 = vmatpush1.msra.mxu0 %v63
  %1229 = vmatprep.subr.mxu0 %v60
  %1230 = vmatpush1.msra.mxu0 %v59
  %1231 = vmatprep.subr.mxu0 %v56
  %1232 = vmatpush1.msra.mxu0 %v55
  %1233 = vmatprep.subr.mxu0 %v52
  %1234 = vmatpush1.msra.mxu0 %v51
  %1235 = vmatprep.subr.mxu0 %v48
  %1236 = vmatpush1.msra.mxu0 %v47
  %1237 = vmatprep.subr.mxu0 %v44
  %1238 = vmatpush1.msra.mxu0 %v43
  %1239 = vmatprep.subr.mxu0 %v40
  %1240 = vmatpush1.msra.mxu0 %v39
  %1241 = vmatprep.subr.mxu0 %v36
  %1242 = vmatpush1.msra.mxu0 %v35
  %1243 = vmatprep.subr.mxu0 %v32
  %1244 = vmatpush1.msra.mxu0 %v31
  %1245 = vmatprep.subr.mxu0 %v28
  %1246 = vmatpush1.msra.mxu0 %v27
  %1247 = vmatprep.subr.mxu0 %v24
  %1248 = vmatpush1.msra.mxu0 %v23
  %1249 = vmatprep.subr.mxu0 %v20
  %1250 = vmatpush1.msra.mxu0 %v19
  %1251 = vmatprep.subr.mxu0 0.0
  %1252 = vmatpush2.msra.mxu0 0.0
  %1253 = vmatprep.subr.mxu0 0.0
  %1254 = vmatpush2.msra.mxu0 0.0
  %1255 = vmatprep.subr.mxu0 0.0
  %1256 = vmatpush2.msra.mxu0 0.0
  %1257 = vmatprep.subr.mxu0 0.0
  %1258 = vmatpush2.msra.mxu0 0.0
  %1259 = vmatprep.subr.mxu0 0.0
  %1260 = vmatpush2.msra.mxu0 0.0
  %1261 = vmatprep.subr.mxu0 0.0
  %1262 = vmatpush2.msra.mxu0 0.0
  %1263 = vmatprep.subr.mxu0 0.0
  %1264 = vmatpush2.msra.mxu0 0.0
  %1265 = vmatprep.subr.mxu0 0.0
  %1266 = vmatpush2.msra.mxu0 0.0
  %1267 = vmatprep.subr.mxu0 0.0
  %1268 = vmatpush2.msra.mxu0 0.0
  %1269 = vmatprep.subr.mxu0 0.0
  %1270 = vmatpush2.msra.mxu0 0.0
  %1271 = vmatprep.subr.mxu0 0.0
  %1272 = vmatpush2.msra.mxu0 0.0
  %1273 = vmatprep.subr.mxu0 0.0
  %1274 = vmatpush2.msra.mxu0 0.0
  %1275 = vmatprep.subr.mxu0 0.0
  %1276 = vmatpush2.msra.mxu0 0.0
  %1277 = vmatprep.subr.mxu0 0.0
  %1278 = vmatpush2.msra.mxu0 0.0
  %1279 = vmatprep.subr.mxu0 0.0
  %1280 = vmatpush2.msra.mxu0 0.0
  %1281 = vmatprep.subr.mxu0 0.0
  %1282 = vmatpush2.msra.mxu0 0.0
  %1283 = vmatprep.mubr.f32.mxu0 0.0
  %1284 = vmatmul.mubr.f32.gmra.mxu0 %v1140
  %v1285 = vpop.f32.mrf.mxu0
  %v1286 = vadd.f32 0.0, %v1285
  %v1287 = vpop.f32.mrf.mxu0
  %v1288 = vadd.f32 0.0, %v1287
  %1289 = vdwg.mxu0
  %v1290 = vadd.f32 %v1144, %v1215
  %v1291 = vadd.f32 %v1145, %v1217
  %v1292 = vadd.f32 %v1146, %v1286
  %v1293 = vadd.f32 %v1147, %v1288
  %v1294 = vxor.u32 %v1290, 2147483648
  %v1295 = vmul.f32 %v1294, 1.442695
  %v1296 = vpow.pop %v1295
  %v1297 = vadd.f32 %v1296, 1.0
  %v1298 = vrcp.pop %v1297
  %v1299 = vmul.f32 1.0, %v1298
  %v1300 = vxor.u32 %v1291, 2147483648
  %v1301 = vmul.f32 %v1300, 1.442695
  %v1302 = vpow.pop %v1301
  %v1303 = vadd.f32 %v1302, 1.0
  %v1304 = vrcp.pop %v1303
  %v1305 = vmul.f32 1.0, %v1304
  %v1306 = vtanh.pop %v1292
  %v1307 = vxor.u32 %v1293, 2147483648
  %v1308 = vmul.f32 %v1307, 1.442695
  %v1309 = vpow.pop %v1308
  %v1310 = vadd.f32 %v1309, 1.0
  %v1311 = vrcp.pop %v1310
  %v1312 = vmul.f32 1.0, %v1311
  %v1313 = vmul.f32 %v1305, %v1138
  %v1314 = vmul.f32 %v1299, %v1306
  %v1315 = vadd.f32 %v1313, %v1314
  %v1316 = vtanh.pop %v1315
  %v1317 = vmul.f32 %v1312, %v1316
  %s1318 = scalar_lea.vmem %s2, 48
  %1319 = vst [vmem:[%s1318] sm:$0xff] %v1317
  %s1320 = scalar_lea.vmem %s0, 224
  %v1321 = vld [vmem:[%s1320] sm:$0xff]
  %v1322 = vld [vmem:[%s1320 + $0x8] sm:$0xff]
  %v1323 = vld [vmem:[%s1320 + $0x10] sm:$0xff]
  %v1324 = vld [vmem:[%s1320 + $0x18] sm:$0xff]
  %1325 = vmatprep.subr.mxu0 %v78
  %1326 = vmatpush1.msra.mxu0 %v77
  %1327 = vmatprep.subr.mxu0 %v74
  %1328 = vmatpush1.msra.mxu0 %v73
  %1329 = vmatprep.subr.mxu0 %v70
  %1330 = vmatpush1.msra.mxu0 %v69
  %1331 = vmatprep.subr.mxu0 %v66
  %1332 = vmatpush1.msra.mxu0 %v65
  %1333 = vmatprep.subr.mxu0 %v62
  %1334 = vmatpush1.msra.mxu0 %v61
  %1335 = vmatprep.subr.mxu0 %v58
  %1336 = vmatpush1.msra.mxu0 %v57
  %1337 = vmatprep.subr.mxu0 %v54
  %1338 = vmatpush1.msra.mxu0 %v53
  %1339 = vmatprep.subr.mxu0 %v50
  %1340 = vmatpush1.msra.mxu0 %v49
  %1341 = vmatprep.subr.mxu0 %v46
  %1342 = vmatpush1.msra.mxu0 %v45
  %1343 = vmatprep.subr.mxu0 %v42
  %1344 = vmatpush1.msra.mxu0 %v41
  %1345 = vmatprep.subr.mxu0 %v38
  %1346 = vmatpush1.msra.mxu0 %v37
  %1347 = vmatprep.subr.mxu0 %v34
  %1348 = vmatpush1.msra.mxu0 %v33
  %1349 = vmatprep.subr.mxu0 %v30
  %1350 = vmatpush1.msra.mxu0 %v29
  %1351 = vmatprep.subr.mxu0 %v26
  %1352 = vmatpush1.msra.mxu0 %v25
  %1353 = vmatprep.subr.mxu0 %v22
  %1354 = vmatpush1.msra.mxu0 %v21
  %1355 = vmatprep.subr.mxu0 %v18
  %1356 = vmatpush1.msra.mxu0 %v17
  %1357 = vmatprep.subr.mxu0 0.0
  %1358 = vmatpush2.msra.mxu0 0.0
  %1359 = vmatprep.subr.mxu0 0.0
  %1360 = vmatpush2.msra.mxu0 0.0
  %1361 = vmatprep.subr.mxu0 0.0
  %1362 = vmatpush2.msra.mxu0 0.0
  %1363 = vmatprep.subr.mxu0 0.0
  %1364 = vmatpush2.msra.mxu0 0.0
  %1365 = vmatprep.subr.mxu0 0.0
  %1366 = vmatpush2.msra.mxu0 0.0
  %1367 = vmatprep.subr.mxu0 0.0
  %1368 = vmatpush2.msra.mxu0 0.0
  %1369 = vmatprep.subr.mxu0 0.0
  %1370 = vmatpush2.msra.mxu0 0.0
  %1371 = vmatprep.subr.mxu0 0.0
  %1372 = vmatpush2.msra.mxu0 0.0
  %1373 = vmatprep.subr.mxu0 0.0
  %1374 = vmatpush2.msra.mxu0 0.0
  %1375 = vmatprep.subr.mxu0 0.0
  %1376 = vmatpush2.msra.mxu0 0.0
  %1377 = vmatprep.subr.mxu0 0.0
  %1378 = vmatpush2.msra.mxu0 0.0
  %1379 = vmatprep.subr.mxu0 0.0
  %1380 = vmatpush2.msra.mxu0 0.0
  %1381 = vmatprep.subr.mxu0 0.0
  %1382 = vmatpush2.msra.mxu0 0.0
  %1383 = vmatprep.subr.mxu0 0.0
  %1384 = vmatpush2.msra.mxu0 0.0
  %1385 = vmatprep.subr.mxu0 0.0
  %1386 = vmatpush2.msra.mxu0 0.0
  %1387 = vmatprep.subr.mxu0 0.0
  %1388 = vmatpush2.msra.mxu0 0.0
  %1389 = vmatprep.mubr.f32.mxu0 0.0
  %1390 = vmatmul.mubr.f32.gmra.mxu0 %v1317
  %v1391 = vpop.f32.mrf.mxu0
  %v1392 = vadd.f32 0.0, %v1391
  %v1393 = vpop.f32.mrf.mxu0
  %v1394 = vadd.f32 0.0, %v1393
  %1395 = vdwg.mxu0
  %1396 = vmatprep.subr.mxu0 %v80
  %1397 = vmatpush1.msra.mxu0 %v79
  %1398 = vmatprep.subr.mxu0 %v76
  %1399 = vmatpush1.msra.mxu0 %v75
  %1400 = vmatprep.subr.mxu0 %v72
  %1401 = vmatpush1.msra.mxu0 %v71
  %1402 = vmatprep.subr.mxu0 %v68
  %1403 = vmatpush1.msra.mxu0 %v67
  %1404 = vmatprep.subr.mxu0 %v64
  %1405 = vmatpush1.msra.mxu0 %v63
  %1406 = vmatprep.subr.mxu0 %v60
  %1407 = vmatpush1.msra.mxu0 %v59
  %1408 = vmatprep.subr.mxu0 %v56
  %1409 = vmatpush1.msra.mxu0 %v55
  %1410 = vmatprep.subr.mxu0 %v52
  %1411 = vmatpush1.msra.mxu0 %v51
  %1412 = vmatprep.subr.mxu0 %v48
  %1413 = vmatpush1.msra.mxu0 %v47
  %1414 = vmatprep.subr.mxu0 %v44
  %1415 = vmatpush1.msra.mxu0 %v43
  %1416 = vmatprep.subr.mxu0 %v40
  %1417 = vmatpush1.msra.mxu0 %v39
  %1418 = vmatprep.subr.mxu0 %v36
  %1419 = vmatpush1.msra.mxu0 %v35
  %1420 = vmatprep.subr.mxu0 %v32
  %1421 = vmatpush1.msra.mxu0 %v31
  %1422 = vmatprep.subr.mxu0 %v28
  %1423 = vmatpush1.msra.mxu0 %v27
  %1424 = vmatprep.subr.mxu0 %v24
  %1425 = vmatpush1.msra.mxu0 %v23
  %1426 = vmatprep.subr.mxu0 %v20
  %1427 = vmatpush1.msra.mxu0 %v19
  %1428 = vmatprep.subr.mxu0 0.0
  %1429 = vmatpush2.msra.mxu0 0.0
  %1430 = vmatprep.subr.mxu0 0.0
  %1431 = vmatpush2.msra.mxu0 0.0
  %1432 = vmatprep.subr.mxu0 0.0
  %1433 = vmatpush2.msra.mxu0 0.0
  %1434 = vmatprep.subr.mxu0 0.0
  %1435 = vmatpush2.msra.mxu0 0.0
  %1436 = vmatprep.subr.mxu0 0.0
  %1437 = vmatpush2.msra.mxu0 0.0
  %1438 = vmatprep.subr.mxu0 0.0
  %1439 = vmatpush2.msra.mxu0 0.0
  %1440 = vmatprep.subr.mxu0 0.0
  %1441 = vmatpush2.msra.mxu0 0.0
  %1442 = vmatprep.subr.mxu0 0.0
  %1443 = vmatpush2.msra.mxu0 0.0
  %1444 = vmatprep.subr.mxu0 0.0
  %1445 = vmatpush2.msra.mxu0 0.0
  %1446 = vmatprep.subr.mxu0 0.0
  %1447 = vmatpush2.msra.mxu0 0.0
  %1448 = vmatprep.subr.mxu0 0.0
  %1449 = vmatpush2.msra.mxu0 0.0
  %1450 = vmatprep.subr.mxu0 0.0
  %1451 = vmatpush2.msra.mxu0 0.0
  %1452 = vmatprep.subr.mxu0 0.0
  %1453 = vmatpush2.msra.mxu0 0.0
  %1454 = vmatprep.subr.mxu0 0.0
  %1455 = vmatpush2.msra.mxu0 0.0
  %1456 = vmatprep.subr.mxu0 0.0
  %1457 = vmatpush2.msra.mxu0 0.0
  %1458 = vmatprep.subr.mxu0 0.0
  %1459 = vmatpush2.msra.mxu0 0.0
  %1460 = vmatprep.mubr.f32.mxu0 0.0
  %1461 = vmatmul.mubr.f32.gmra.mxu0 %v1317
  %v1462 = vpop.f32.mrf.mxu0
  %v1463 = vadd.f32 0.0, %v1462
  %v1464 = vpop.f32.mrf.mxu0
  %v1465 = vadd.f32 0.0, %v1464
  %1466 = vdwg.mxu0
  %v1467 = vadd.f32 %v1321, %v1392
  %v1468 = vadd.f32 %v1322, %v1394
  %v1469 = vadd.f32 %v1323, %v1463
  %v1470 = vadd.f32 %v1324, %v1465
  %v1471 = vxor.u32 %v1467, 2147483648
  %v1472 = vmul.f32 %v1471, 1.442695
  %v1473 = vpow.pop %v1472
  %v1474 = vadd.f32 %v1473, 1.0
  %v1475 = vrcp.pop %v1474
  %v1476 = vmul.f32 1.0, %v1475
  %v1477 = vxor.u32 %v1468, 2147483648
  %v1478 = vmul.f32 %v1477, 1.442695
  %v1479 = vpow.pop %v1478
  %v1480 = vadd.f32 %v1479, 1.0
  %v1481 = vrcp.pop %v1480
  %v1482 = vmul.f32 1.0, %v1481
  %v1483 = vtanh.pop %v1469
  %v1484 = vxor.u32 %v1470, 2147483648
  %v1485 = vmul.f32 %v1484, 1.442695
  %v1486 = vpow.pop %v1485
  %v1487 = vadd.f32 %v1486, 1.0
  %v1488 = vrcp.pop %v1487
  %v1489 = vmul.f32 1.0, %v1488
  %v1490 = vmul.f32 %v1482, %v1315
  %v1491 = vmul.f32 %v1476, %v1483
  %v1492 = vadd.f32 %v1490, %v1491
  %v1493 = vtanh.pop %v1492
  %v1494 = vmul.f32 %v1489, %v1493
  %s1495 = scalar_lea.vmem %s2, 56
  %1496 = vst [vmem:[%s1495] sm:$0xff] %v1494
  %1497 = vst [vmem:[#allocation2] sm:$0xff] %v1494
  %1498 = vst [vmem:[#allocation3] sm:$0xff] %v1492
  // Predicated region
  $region14: #{dkt_forward.4} parent=0 // pred_check
    _
  $region15: #{dkt_forward.4} parent=0 // pred_check_branch
    %1500 = sbr.rel (0) target = $region17
  $region16: #{dkt_forward.4} parent=0 // pred_region
    _
  $region17: #{dkt_forward.4} parent=0 // pred_fallthru
    _
  // Predicated region
  $region18: #{dkt_forward.4} parent=0 // pred_check
    _
  $region19: #{dkt_forward.4} parent=0 // pred_check_branch
    %1502 = sbr.rel (0) target = $region21
  $region20: #{dkt_forward.4} parent=0 // pred_region
    _
  $region21: #{dkt_forward.4} parent=0 // pred_fallthru
    _

</llo_original>
